<compile_context>
chip_gen: v7x
topology: tpu7x:2x2x1
jax: 0.10.0
libtpu: 0.0.40
codegen_flags: <defaults>
</compile_context>

<pallas_src>
import jax
import jax.numpy as jnp
from jax.experimental import pallas as pl
from jax.experimental.pallas import tpu as pltpu

# ----------------------------- configuration --------------------------------
BATCH = 2
SEQ = 8
DENSE = 32          # dense_size (hidden width)
N_ADAPTERS = 4      # number of fused adapters (key/value dim 2)
TEMPERATURE = 1.0   # config['temperature'] == False  ->  T = 1.0


def _make_kernel(n_adapters, dense, temperature):
    inv_t = 1.0 / float(temperature)

    def kernel(q_ref, k_ref, v_ref, res_ref,
               wq_ref, bq_ref, wk_ref, bk_ref, wv_ref, out_ref):
        # q_ref/res_ref/out_ref: (TR, D); k_ref/v_ref: (TR, N*D) lane-folded.
        # wq: (D, D); wk/wv: block-diagonal (N*D, N*D); biases f32.
        # One MXU matmul per operand (adapter axis folded into lanes),
        # f32 accumulation, bias added once.
        qp = jnp.dot(q_ref[...], wq_ref[...],
                     preferred_element_type=jnp.float32) + bq_ref[...]
        kp = jnp.dot(k_ref[...], wk_ref[...],
                     preferred_element_type=jnp.float32) + bk_ref[...]
        vp = jnp.dot(v_ref[...], wv_ref[...],
                     preferred_element_type=jnp.float32)

        # Attention scores per adapter: static lane-block slice of the fused K
        # projection dotted with q.  Kept as (TR, 1) columns -> no (TR, N)
        # relayout is ever materialized.
        s_cols = []
        for n in range(n_adapters):
            kp_n = kp[:, n * dense:(n + 1) * dense]
            s_cols.append(jnp.sum(qp * kp_n, axis=-1, keepdims=True))

        # Softmax over the adapter axis (temperature T), column-wise.
        m = s_cols[0]
        for s in s_cols[1:]:
            m = jnp.maximum(m, s)
        e_cols = [jnp.exp((s - m) * inv_t) for s in s_cols]
        denom = e_cols[0]
        for e in e_cols[1:]:
            denom = denom + e
        inv_denom = pl.reciprocal(denom, approx=False)   # exact normalization

        ctx = e_cols[0] * vp[:, 0:dense]
        for n in range(1, n_adapters):
            ctx = ctx + e_cols[n] * vp[:, n * dense:(n + 1) * dense]

        # residual_before = False -> residual added after the fusion attention.
        out_ref[...] = ctx * inv_denom + res_ref[...]

    return kernel


def bert_fusion_forward(query, key, value, residual,
                        wq, bq, wk, bk, wv, *,
                        row_tile=None, use_bf16=True,
                        single_buffer_weights=True):
    B, S, N, D = key.shape
    assert value.shape == key.shape
    R = B * S
    ND = N * D

    # ---- layout plumbing: contiguous (free) reshapes only, no transposes ----
    q2 = query.reshape(R, D)
    r2 = residual.reshape(R, D).astype(jnp.float32)
    k2 = key.reshape(R, ND)          # (b,s,n,d) -> row b*S+s, lane n*D+d
    v2 = value.reshape(R, ND)

    # Fold the adapter axis into the lane axis of the projection weights:
    # block-diagonal (N*D, N*D) weights turn the N per-adapter projections
    # into a single lane-dense matmul each, with one bias add.
    eye = jnp.eye(N, dtype=wk.dtype)
    wk_blk = jnp.kron(eye, wk)                 # (ND, ND)
    wv_blk = jnp.kron(eye, wv)                 # (ND, ND)
    bk_blk = jnp.tile(bk, (1, N))              # (1, ND)

    # MXU operands in bf16 (f32 accumulation in-kernel); elementwise math,
    # biases and residual stay f32.
    mxu_dtype = jnp.bfloat16 if use_bf16 else jnp.float32
    q2 = q2.astype(mxu_dtype)
    k2 = k2.astype(mxu_dtype)
    v2 = v2.astype(mxu_dtype)
    wq_m = wq.astype(mxu_dtype)
    wk_m = wk_blk.astype(mxu_dtype)
    wv_m = wv_blk.astype(mxu_dtype)
    bq_f = bq.astype(jnp.float32)
    bk_f = bk_blk.astype(jnp.float32)

    # ---- tiling: >= 2 parallel steps (v7x megacore), <= 256 rows (v7x VMEM) --
    if row_tile is None:
        row_tile = R if R <= 8 else min(256, R // 2)
    assert R % row_tile == 0, "tail tiles not handled"  # TODO(synk): mask ragged B*S
    grid = (R // row_tile,)

    # Explicit VMEM budget derived from the actual tiles (with headroom).
    isz = 2 if use_bf16 else 4
    act_bytes = 2 * row_tile * (D * isz + 2 * ND * isz + 2 * D * 4)
    w_bufs = 1 if single_buffer_weights else 2
    w_bytes = w_bufs * ((D * D + 2 * ND * ND) * isz + (D + ND) * 4)
    vmem_limit = int(min(100 << 20, max(16 << 20, 4 * (act_bytes + w_bytes))))

    kernel = _make_kernel(N, D, TEMPERATURE)

    def build_call(single_buffer):
        def wspec(shape):
            if single_buffer:
                return pl.BlockSpec(shape, lambda i: (0, 0),
                                    pipeline_mode=pl.Buffered(1))
            return pl.BlockSpec(shape, lambda i: (0, 0))

        return pl.pallas_call(
            kernel,
            out_shape=jax.ShapeDtypeStruct((R, D), jnp.float32),
            grid_spec=pltpu.PrefetchScalarGridSpec(
                num_scalar_prefetch=0,
                grid=grid,
                in_specs=[
                    pl.BlockSpec((row_tile, D), lambda i: (i, 0)),    # query
                    pl.BlockSpec((row_tile, ND), lambda i: (i, 0)),   # key (lane-folded)
                    pl.BlockSpec((row_tile, ND), lambda i: (i, 0)),   # value (lane-folded)
                    pl.BlockSpec((row_tile, D), lambda i: (i, 0)),    # residual
                    wspec((D, D)),                                    # Wq (resident)
                    wspec((1, D)),                                    # bq
                    wspec((ND, ND)),                                  # Wk block-diag
                    wspec((1, ND)),                                   # bk tiled
                    wspec((ND, ND)),                                  # Wv block-diag
                ],
                out_specs=pl.BlockSpec((row_tile, D), lambda i: (i, 0)),
            ),
            compiler_params=pltpu.CompilerParams(
                dimension_semantics=("parallel",),
                vmem_limit_bytes=vmem_limit),
        )

    args = (q2, k2, v2, r2, wq_m, bq_f, wk_m, bk_f, wv_m)
    if single_buffer_weights:
        try:
            out = build_call(True)(*args)
        except Exception:
            # pipeline_mode / Buffered(1) unsupported on this JAX build:
            # fall back to default (double-buffered) resident weights.
            out = build_call(False)(*args)
    else:
        out = build_call(False)(*args)
    return out.reshape(B, S, D)


if __name__ == "__main__":
    key0 = jax.random.PRNGKey(0)
    kq, kk, kv, kr, kw1, kw2, kw3, kw4, kw5 = jax.random.split(key0, 9)

    query = jax.random.normal(kq, (BATCH, SEQ, DENSE), dtype=jnp.float32)
    key_in = jax.random.normal(kk, (BATCH, SEQ, N_ADAPTERS, DENSE),
                               dtype=jnp.float32)
    value = jax.random.normal(kv, (BATCH, SEQ, N_ADAPTERS, DENSE),
                              dtype=jnp.float32)
    residual = jax.random.normal(kr, (BATCH, SEQ, DENSE), dtype=jnp.float32)

    # nn.Linear parameters stored as (in, out) matrices so the kernel computes
    # x @ W + b (equivalent to PyTorch's x @ weight.T + bias).
    wq = 0.2 * jax.random.normal(kw1, (DENSE, DENSE), dtype=jnp.float32)
    bq = 0.1 * jax.random.normal(kw2, (1, DENSE), dtype=jnp.float32)
    wk = 0.2 * jax.random.normal(kw3, (DENSE, DENSE), dtype=jnp.float32)
    bk = 0.1 * jax.random.normal(kw4, (1, DENSE), dtype=jnp.float32)
    wv = 0.2 * jax.random.normal(kw5, (DENSE, DENSE), dtype=jnp.float32)  # no bias

    out = bert_fusion_forward(query, key_in, value, residual,
                              wq, bq, wk, bk, wv)
    out = jax.block_until_ready(out)

    # Pure-JAX reference.  MXU operands are quantized to bf16 exactly like the
    # kernel wrapper (f32 accumulation), so the check isolates kernel
    # structure from bf16 operand rounding.
    def ref(q, k, v, res):
        f = lambda x: x.astype(jnp.bfloat16).astype(jnp.float32)
        qp = f(q) @ f(wq) + bq[0]
        kp = jnp.einsum("bsnd,de->bsne", f(k), f(wk)) + bk[0]
        vp = jnp.einsum("bsnd,de->bsne", f(v), f(wv))
        scores = jnp.einsum("bsd,bsnd->bsn", qp, kp)
        probs = jax.nn.softmax(scores / TEMPERATURE, axis=-1)
        ctx = jnp.einsum("bsn,bsnd->bsd", probs, vp)
        return ctx + res

    out_ref = ref(query, key_in, value, residual)
    assert jnp.allclose(out, out_ref, atol=2e-3, rtol=2e-3), "output mismatch"

    print("KERNEL_OK")
</pallas_src>

<mosaic_0001>
module attributes {stable_mosaic.version = 11 : i64} {
  func.func @kernel(%arg0: i32, %arg1: memref<8x32xbf16, #tpu.memory_space<vmem>>, %arg2: memref<8x128xbf16, #tpu.memory_space<vmem>>, %arg3: memref<8x128xbf16, #tpu.memory_space<vmem>>, %arg4: memref<8x32xf32, #tpu.memory_space<vmem>>, %arg5: memref<32x32xbf16, #tpu.memory_space<vmem>>, %arg6: memref<1x32xf32, #tpu.memory_space<vmem>>, %arg7: memref<128x128xbf16, #tpu.memory_space<vmem>>, %arg8: memref<1x128xf32, #tpu.memory_space<vmem>>, %arg9: memref<128x128xbf16, #tpu.memory_space<vmem>>, %arg10: memref<8x32xf32, #tpu.memory_space<vmem>>) attributes {dimension_semantics = [#tpu.dimension_semantics<parallel>], iteration_bounds = array<i64: 2>, scalar_prefetch = 0 : i64, scratch_operands = 0 : i64, tpu.core_type = #tpu.core_type<tc>, window_params = [{transform_indices = @transform_0, window_bounds = array<i64: 8, 32>}, {transform_indices = @transform_1, window_bounds = array<i64: 8, 128>}, {transform_indices = @transform_2, window_bounds = array<i64: 8, 128>}, {transform_indices = @transform_3, window_bounds = array<i64: 8, 32>}, {pipeline_mode = #tpu.pipeline_mode<synchronous>, transform_indices = @transform_4, window_bounds = array<i64: 32, 32>}, {pipeline_mode = #tpu.pipeline_mode<synchronous>, transform_indices = @transform_5, window_bounds = array<i64: 1, 32>}, {pipeline_mode = #tpu.pipeline_mode<synchronous>, transform_indices = @transform_6, window_bounds = array<i64: 128, 128>}, {pipeline_mode = #tpu.pipeline_mode<synchronous>, transform_indices = @transform_7, window_bounds = array<i64: 1, 128>}, {pipeline_mode = #tpu.pipeline_mode<synchronous>, transform_indices = @transform_8, window_bounds = array<i64: 128, 128>}, {transform_indices = @transform_9, window_bounds = array<i64: 8, 32>}]} {
    %c0 = arith.constant 0 : index
    %c0_0 = arith.constant 0 : index
    %0 = vector.load %arg1[%c0, %c0_0] : memref<8x32xbf16, #tpu.memory_space<vmem>>, vector<8x32xbf16>
    %c0_1 = arith.constant 0 : index
    %c0_2 = arith.constant 0 : index
    %1 = vector.load %arg5[%c0_1, %c0_2] : memref<32x32xbf16, #tpu.memory_space<vmem>>, vector<32x32xbf16>
    %cst = arith.constant dense<0.000000e+00> : vector<8x32xf32>
    %2 = tpu.matmul %0, %1, %cst {dimension_numbers = #tpu.dot_dimension_numbers<[1], [0], [0], [1], [0, 0, 1, 1], [], []>} : vector<8x32xbf16>, vector<32x32xbf16>, vector<8x32xf32> -> vector<8x32xf32>
    %c0_3 = arith.constant 0 : index
    %c0_4 = arith.constant 0 : index
    %3 = vector.load %arg6[%c0_3, %c0_4] : memref<1x32xf32, #tpu.memory_space<vmem>>, vector<1x32xf32>
    %4 = vector.broadcast %3 : vector<1x32xf32> to vector<8x32xf32>
    %5 = arith.addf %2, %4 : vector<8x32xf32>
    %c0_5 = arith.constant 0 : index
    %c0_6 = arith.constant 0 : index
    %6 = vector.load %arg2[%c0_5, %c0_6] : memref<8x128xbf16, #tpu.memory_space<vmem>>, vector<8x128xbf16>
    %c0_7 = arith.constant 0 : index
    %c0_8 = arith.constant 0 : index
    %7 = vector.load %arg7[%c0_7, %c0_8] : memref<128x128xbf16, #tpu.memory_space<vmem>>, vector<128x128xbf16>
    %cst_9 = arith.constant dense<0.000000e+00> : vector<8x128xf32>
    %8 = tpu.matmul %6, %7, %cst_9 {dimension_numbers = #tpu.dot_dimension_numbers<[1], [0], [0], [1], [0, 0, 1, 1], [], []>} : vector<8x128xbf16>, vector<128x128xbf16>, vector<8x128xf32> -> vector<8x128xf32>
    %c0_10 = arith.constant 0 : index
    %c0_11 = arith.constant 0 : index
    %9 = vector.load %arg8[%c0_10, %c0_11] : memref<1x128xf32, #tpu.memory_space<vmem>>, vector<1x128xf32>
    %10 = vector.broadcast %9 : vector<1x128xf32> to vector<8x128xf32>
    %11 = arith.addf %8, %10 : vector<8x128xf32>
    %c0_12 = arith.constant 0 : index
    %c0_13 = arith.constant 0 : index
    %12 = vector.load %arg3[%c0_12, %c0_13] : memref<8x128xbf16, #tpu.memory_space<vmem>>, vector<8x128xbf16>
    %c0_14 = arith.constant 0 : index
    %c0_15 = arith.constant 0 : index
    %13 = vector.load %arg9[%c0_14, %c0_15] : memref<128x128xbf16, #tpu.memory_space<vmem>>, vector<128x128xbf16>
    %cst_16 = arith.constant dense<0.000000e+00> : vector<8x128xf32>
    %14 = tpu.matmul %12, %13, %cst_16 {dimension_numbers = #tpu.dot_dimension_numbers<[1], [0], [0], [1], [0, 0, 1, 1], [], []>} : vector<8x128xbf16>, vector<128x128xbf16>, vector<8x128xf32> -> vector<8x128xf32>
    %15 = vector.extract_strided_slice %11 {offsets = [0, 0], sizes = [8, 32], strides = [1, 1]} : vector<8x128xf32> to vector<8x32xf32>
    %16 = arith.mulf %5, %15 : vector<8x32xf32>
    %cst_17 = arith.constant dense<0.000000e+00> : vector<8xf32>
    %17 = vector.multi_reduction <add>, %16, %cst_17 [1] : vector<8x32xf32> to vector<8xf32>
    %18 = vector.shape_cast %17 : vector<8xf32> to vector<8x1xf32>
    %19 = vector.extract_strided_slice %11 {offsets = [0, 32], sizes = [8, 32], strides = [1, 1]} : vector<8x128xf32> to vector<8x32xf32>
    %20 = arith.mulf %5, %19 : vector<8x32xf32>
    %cst_18 = arith.constant dense<0.000000e+00> : vector<8xf32>
    %21 = vector.multi_reduction <add>, %20, %cst_18 [1] : vector<8x32xf32> to vector<8xf32>
    %22 = vector.shape_cast %21 : vector<8xf32> to vector<8x1xf32>
    %23 = vector.extract_strided_slice %11 {offsets = [0, 64], sizes = [8, 32], strides = [1, 1]} : vector<8x128xf32> to vector<8x32xf32>
    %24 = arith.mulf %5, %23 : vector<8x32xf32>
    %cst_19 = arith.constant dense<0.000000e+00> : vector<8xf32>
    %25 = vector.multi_reduction <add>, %24, %cst_19 [1] : vector<8x32xf32> to vector<8xf32>
    %26 = vector.shape_cast %25 : vector<8xf32> to vector<8x1xf32>
    %27 = vector.extract_strided_slice %11 {offsets = [0, 96], sizes = [8, 32], strides = [1, 1]} : vector<8x128xf32> to vector<8x32xf32>
    %28 = arith.mulf %5, %27 : vector<8x32xf32>
    %cst_20 = arith.constant dense<0.000000e+00> : vector<8xf32>
    %29 = vector.multi_reduction <add>, %28, %cst_20 [1] : vector<8x32xf32> to vector<8xf32>
    %30 = vector.shape_cast %29 : vector<8xf32> to vector<8x1xf32>
    %31 = arith.maximumf %18, %22 : vector<8x1xf32>
    %32 = arith.maximumf %31, %26 : vector<8x1xf32>
    %33 = arith.maximumf %32, %30 : vector<8x1xf32>
    %34 = arith.subf %18, %33 : vector<8x1xf32>
    %cst_21 = arith.constant 1.000000e+00 : f32
    %35 = vector.broadcast %cst_21 : f32 to vector<8x1xf32>
    %36 = arith.mulf %34, %35 : vector<8x1xf32>
    %37 = math.exp %36 : vector<8x1xf32>
    %38 = arith.subf %22, %33 : vector<8x1xf32>
    %cst_22 = arith.constant 1.000000e+00 : f32
    %39 = vector.broadcast %cst_22 : f32 to vector<8x1xf32>
    %40 = arith.mulf %38, %39 : vector<8x1xf32>
    %41 = math.exp %40 : vector<8x1xf32>
    %42 = arith.subf %26, %33 : vector<8x1xf32>
    %cst_23 = arith.constant 1.000000e+00 : f32
    %43 = vector.broadcast %cst_23 : f32 to vector<8x1xf32>
    %44 = arith.mulf %42, %43 : vector<8x1xf32>
    %45 = math.exp %44 : vector<8x1xf32>
    %46 = arith.subf %30, %33 : vector<8x1xf32>
    %cst_24 = arith.constant 1.000000e+00 : f32
    %47 = vector.broadcast %cst_24 : f32 to vector<8x1xf32>
    %48 = arith.mulf %46, %47 : vector<8x1xf32>
    %49 = math.exp %48 : vector<8x1xf32>
    %50 = arith.addf %37, %41 : vector<8x1xf32>
    %51 = arith.addf %50, %45 : vector<8x1xf32>
    %52 = arith.addf %51, %49 : vector<8x1xf32>
    %53 = tpu.reciprocal %52 : vector<8x1xf32> -> vector<8x1xf32>
    %54 = vector.extract_strided_slice %14 {offsets = [0, 0], sizes = [8, 32], strides = [1, 1]} : vector<8x128xf32> to vector<8x32xf32>
    %55 = vector.broadcast %37 : vector<8x1xf32> to vector<8x32xf32>
    %56 = arith.mulf %55, %54 : vector<8x32xf32>
    %57 = vector.extract_strided_slice %14 {offsets = [0, 32], sizes = [8, 32], strides = [1, 1]} : vector<8x128xf32> to vector<8x32xf32>
    %58 = vector.broadcast %41 : vector<8x1xf32> to vector<8x32xf32>
    %59 = arith.mulf %58, %57 : vector<8x32xf32>
    %60 = arith.addf %56, %59 : vector<8x32xf32>
    %61 = vector.extract_strided_slice %14 {offsets = [0, 64], sizes = [8, 32], strides = [1, 1]} : vector<8x128xf32> to vector<8x32xf32>
    %62 = vector.broadcast %45 : vector<8x1xf32> to vector<8x32xf32>
    %63 = arith.mulf %62, %61 : vector<8x32xf32>
    %64 = arith.addf %60, %63 : vector<8x32xf32>
    %65 = vector.extract_strided_slice %14 {offsets = [0, 96], sizes = [8, 32], strides = [1, 1]} : vector<8x128xf32> to vector<8x32xf32>
    %66 = vector.broadcast %49 : vector<8x1xf32> to vector<8x32xf32>
    %67 = arith.mulf %66, %65 : vector<8x32xf32>
    %68 = arith.addf %64, %67 : vector<8x32xf32>
    %69 = vector.broadcast %53 : vector<8x1xf32> to vector<8x32xf32>
    %70 = arith.mulf %68, %69 : vector<8x32xf32>
    %c0_25 = arith.constant 0 : index
    %c0_26 = arith.constant 0 : index
    %71 = vector.load %arg4[%c0_25, %c0_26] : memref<8x32xf32, #tpu.memory_space<vmem>>, vector<8x32xf32>
    %72 = arith.addf %70, %71 : vector<8x32xf32>
    %c0_27 = arith.constant 0 : index
    %c0_28 = arith.constant 0 : index
    %73 = vector.load %arg10[%c0_27, %c0_28] : memref<8x32xf32, #tpu.memory_space<vmem>>, vector<8x32xf32>
    tpu.vector_store %arg10[%c0_27, %c0_28], %72 {strides = array<i32>} : memref<8x32xf32, #tpu.memory_space<vmem>>, vector<8x32xf32>,
    return
  }
  func.func @transform_0(%arg0: i32) -> (i32, i32) {
    %c0_i32 = arith.constant 0 : i32
    %c0_i32_0 = arith.constant 0 : i32
    return %arg0, %c0_i32 : i32, i32
  }
  func.func @transform_1(%arg0: i32) -> (i32, i32) {
    %c0_i32 = arith.constant 0 : i32
    %c0_i32_0 = arith.constant 0 : i32
    return %arg0, %c0_i32 : i32, i32
  }
  func.func @transform_2(%arg0: i32) -> (i32, i32) {
    %c0_i32 = arith.constant 0 : i32
    %c0_i32_0 = arith.constant 0 : i32
    return %arg0, %c0_i32 : i32, i32
  }
  func.func @transform_3(%arg0: i32) -> (i32, i32) {
    %c0_i32 = arith.constant 0 : i32
    %c0_i32_0 = arith.constant 0 : i32
    return %arg0, %c0_i32 : i32, i32
  }
  func.func @transform_4(%arg0: i32) -> (i32, i32) {
    %c0_i32 = arith.constant 0 : i32
    %c0_i32_0 = arith.constant 0 : i32
    %c0_i32_1 = arith.constant 0 : i32
    return %c0_i32, %c0_i32_0 : i32, i32
  }
  func.func @transform_5(%arg0: i32) -> (i32, i32) {
    %c0_i32 = arith.constant 0 : i32
    %c0_i32_0 = arith.constant 0 : i32
    %c0_i32_1 = arith.constant 0 : i32
    return %c0_i32, %c0_i32_0 : i32, i32
  }
  func.func @transform_6(%arg0: i32) -> (i32, i32) {
    %c0_i32 = arith.constant 0 : i32
    %c0_i32_0 = arith.constant 0 : i32
    %c0_i32_1 = arith.constant 0 : i32
    return %c0_i32, %c0_i32_0 : i32, i32
  }
  func.func @transform_7(%arg0: i32) -> (i32, i32) {
    %c0_i32 = arith.constant 0 : i32
    %c0_i32_0 = arith.constant 0 : i32
    %c0_i32_1 = arith.constant 0 : i32
    return %c0_i32, %c0_i32_0 : i32, i32
  }
  func.func @transform_8(%arg0: i32) -> (i32, i32) {
    %c0_i32 = arith.constant 0 : i32
    %c0_i32_0 = arith.constant 0 : i32
    %c0_i32_1 = arith.constant 0 : i32
    return %c0_i32, %c0_i32_0 : i32, i32
  }
  func.func @transform_9(%arg0: i32) -> (i32, i32) {
    %c0_i32 = arith.constant 0 : i32
    %c0_i32_0 = arith.constant 0 : i32
    return %arg0, %c0_i32 : i32, i32
  }
}

module attributes {stable_mosaic.version = 11 : i64} {
  func.func @kernel(%arg0: i32, %arg1: memref<8x32xbf16, #tpu.memory_space<vmem>>, %arg2: memref<8x128xbf16, #tpu.memory_space<vmem>>, %arg3: memref<8x128xbf16, #tpu.memory_space<vmem>>, %arg4: memref<8x32xf32, #tpu.memory_space<vmem>>, %arg5: memref<32x32xbf16, #tpu.memory_space<vmem>>, %arg6: memref<1x32xf32, #tpu.memory_space<vmem>>, %arg7: memref<128x128xbf16, #tpu.memory_space<vmem>>, %arg8: memref<1x128xf32, #tpu.memory_space<vmem>>, %arg9: memref<128x128xbf16, #tpu.memory_space<vmem>>, %arg10: memref<8x32xf32, #tpu.memory_space<vmem>>) attributes {dimension_semantics = [#tpu.dimension_semantics<parallel>], iteration_bounds = array<i64: 2>, scalar_prefetch = 0 : i64, scratch_operands = 0 : i64, tpu.core_type = #tpu.core_type<tc>, window_params = [{transform_indices = @transform_0, window_bounds = array<i64: 8, 32>}, {transform_indices = @transform_1, window_bounds = array<i64: 8, 128>}, {transform_indices = @transform_2, window_bounds = array<i64: 8, 128>}, {transform_indices = @transform_3, window_bounds = array<i64: 8, 32>}, {pipeline_mode = #tpu.pipeline_mode<synchronous>, transform_indices = @transform_4, window_bounds = array<i64: 32, 32>}, {pipeline_mode = #tpu.pipeline_mode<synchronous>, transform_indices = @transform_5, window_bounds = array<i64: 1, 32>}, {pipeline_mode = #tpu.pipeline_mode<synchronous>, transform_indices = @transform_6, window_bounds = array<i64: 128, 128>}, {pipeline_mode = #tpu.pipeline_mode<synchronous>, transform_indices = @transform_7, window_bounds = array<i64: 1, 128>}, {pipeline_mode = #tpu.pipeline_mode<synchronous>, transform_indices = @transform_8, window_bounds = array<i64: 128, 128>}, {transform_indices = @transform_9, window_bounds = array<i64: 8, 32>}]} {
    %c0 = arith.constant 0 : index
    %c0_0 = arith.constant 0 : index
    %0 = vector.load %arg1[%c0, %c0_0] : memref<8x32xbf16, #tpu.memory_space<vmem>>, vector<8x32xbf16>
    %c0_1 = arith.constant 0 : index
    %c0_2 = arith.constant 0 : index
    %1 = vector.load %arg5[%c0_1, %c0_2] : memref<32x32xbf16, #tpu.memory_space<vmem>>, vector<32x32xbf16>
    %cst = arith.constant dense<0.000000e+00> : vector<8x32xf32>
    %2 = tpu.matmul %0, %1, %cst {dimension_numbers = #tpu.dot_dimension_numbers<[1], [0], [0], [1], [0, 0, 1, 1], [], []>} : vector<8x32xbf16>, vector<32x32xbf16>, vector<8x32xf32> -> vector<8x32xf32>
    %c0_3 = arith.constant 0 : index
    %c0_4 = arith.constant 0 : index
    %3 = vector.load %arg6[%c0_3, %c0_4] : memref<1x32xf32, #tpu.memory_space<vmem>>, vector<1x32xf32>
    %4 = vector.broadcast %3 : vector<1x32xf32> to vector<8x32xf32>
    %5 = arith.addf %2, %4 : vector<8x32xf32>
    %c0_5 = arith.constant 0 : index
    %c0_6 = arith.constant 0 : index
    %6 = vector.load %arg2[%c0_5, %c0_6] : memref<8x128xbf16, #tpu.memory_space<vmem>>, vector<8x128xbf16>
    %c0_7 = arith.constant 0 : index
    %c0_8 = arith.constant 0 : index
    %7 = vector.load %arg7[%c0_7, %c0_8] : memref<128x128xbf16, #tpu.memory_space<vmem>>, vector<128x128xbf16>
    %cst_9 = arith.constant dense<0.000000e+00> : vector<8x128xf32>
    %8 = tpu.matmul %6, %7, %cst_9 {dimension_numbers = #tpu.dot_dimension_numbers<[1], [0], [0], [1], [0, 0, 1, 1], [], []>} : vector<8x128xbf16>, vector<128x128xbf16>, vector<8x128xf32> -> vector<8x128xf32>
    %c0_10 = arith.constant 0 : index
    %c0_11 = arith.constant 0 : index
    %9 = vector.load %arg8[%c0_10, %c0_11] : memref<1x128xf32, #tpu.memory_space<vmem>>, vector<1x128xf32>
    %10 = vector.broadcast %9 : vector<1x128xf32> to vector<8x128xf32>
    %11 = arith.addf %8, %10 : vector<8x128xf32>
    %c0_12 = arith.constant 0 : index
    %c0_13 = arith.constant 0 : index
    %12 = vector.load %arg3[%c0_12, %c0_13] : memref<8x128xbf16, #tpu.memory_space<vmem>>, vector<8x128xbf16>
    %c0_14 = arith.constant 0 : index
    %c0_15 = arith.constant 0 : index
    %13 = vector.load %arg9[%c0_14, %c0_15] : memref<128x128xbf16, #tpu.memory_space<vmem>>, vector<128x128xbf16>
    %cst_16 = arith.constant dense<0.000000e+00> : vector<8x128xf32>
    %14 = tpu.matmul %12, %13, %cst_16 {dimension_numbers = #tpu.dot_dimension_numbers<[1], [0], [0], [1], [0, 0, 1, 1], [], []>} : vector<8x128xbf16>, vector<128x128xbf16>, vector<8x128xf32> -> vector<8x128xf32>
    %15 = vector.extract_strided_slice %11 {offsets = [0, 0], sizes = [8, 32], strides = [1, 1]} : vector<8x128xf32> to vector<8x32xf32>
    %16 = arith.mulf %5, %15 : vector<8x32xf32>
    %cst_17 = arith.constant dense<0.000000e+00> : vector<8xf32>
    %17 = vector.multi_reduction <add>, %16, %cst_17 [1] : vector<8x32xf32> to vector<8xf32>
    %18 = vector.shape_cast %17 : vector<8xf32> to vector<8x1xf32>
    %19 = vector.extract_strided_slice %11 {offsets = [0, 32], sizes = [8, 32], strides = [1, 1]} : vector<8x128xf32> to vector<8x32xf32>
    %20 = arith.mulf %5, %19 : vector<8x32xf32>
    %cst_18 = arith.constant dense<0.000000e+00> : vector<8xf32>
    %21 = vector.multi_reduction <add>, %20, %cst_18 [1] : vector<8x32xf32> to vector<8xf32>
    %22 = vector.shape_cast %21 : vector<8xf32> to vector<8x1xf32>
    %23 = vector.extract_strided_slice %11 {offsets = [0, 64], sizes = [8, 32], strides = [1, 1]} : vector<8x128xf32> to vector<8x32xf32>
    %24 = arith.mulf %5, %23 : vector<8x32xf32>
    %cst_19 = arith.constant dense<0.000000e+00> : vector<8xf32>
    %25 = vector.multi_reduction <add>, %24, %cst_19 [1] : vector<8x32xf32> to vector<8xf32>
    %26 = vector.shape_cast %25 : vector<8xf32> to vector<8x1xf32>
    %27 = vector.extract_strided_slice %11 {offsets = [0, 96], sizes = [8, 32], strides = [1, 1]} : vector<8x128xf32> to vector<8x32xf32>
    %28 = arith.mulf %5, %27 : vector<8x32xf32>
    %cst_20 = arith.constant dense<0.000000e+00> : vector<8xf32>
    %29 = vector.multi_reduction <add>, %28, %cst_20 [1] : vector<8x32xf32> to vector<8xf32>
    %30 = vector.shape_cast %29 : vector<8xf32> to vector<8x1xf32>
    %31 = arith.maximumf %18, %22 : vector<8x1xf32>
    %32 = arith.maximumf %31, %26 : vector<8x1xf32>
    %33 = arith.maximumf %32, %30 : vector<8x1xf32>
    %34 = arith.subf %18, %33 : vector<8x1xf32>
    %cst_21 = arith.constant 1.000000e+00 : f32
    %35 = vector.broadcast %cst_21 : f32 to vector<8x1xf32>
    %36 = arith.mulf %34, %35 : vector<8x1xf32>
    %37 = math.exp %36 : vector<8x1xf32>
    %38 = arith.subf %22, %33 : vector<8x1xf32>
    %cst_22 = arith.constant 1.000000e+00 : f32
    %39 = vector.broadcast %cst_22 : f32 to vector<8x1xf32>
    %40 = arith.mulf %38, %39 : vector<8x1xf32>
    %41 = math.exp %40 : vector<8x1xf32>
    %42 = arith.subf %26, %33 : vector<8x1xf32>
    %cst_23 = arith.constant 1.000000e+00 : f32
    %43 = vector.broadcast %cst_23 : f32 to vector<8x1xf32>
    %44 = arith.mulf %42, %43 : vector<8x1xf32>
    %45 = math.exp %44 : vector<8x1xf32>
    %46 = arith.subf %30, %33 : vector<8x1xf32>
    %cst_24 = arith.constant 1.000000e+00 : f32
    %47 = vector.broadcast %cst_24 : f32 to vector<8x1xf32>
    %48 = arith.mulf %46, %47 : vector<8x1xf32>
    %49 = math.exp %48 : vector<8x1xf32>
    %50 = arith.addf %37, %41 : vector<8x1xf32>
    %51 = arith.addf %50, %45 : vector<8x1xf32>
    %52 = arith.addf %51, %49 : vector<8x1xf32>
    %53 = tpu.reciprocal %52 : vector<8x1xf32> -> vector<8x1xf32>
    %54 = vector.extract_strided_slice %14 {offsets = [0, 0], sizes = [8, 32], strides = [1, 1]} : vector<8x128xf32> to vector<8x32xf32>
    %55 = vector.broadcast %37 : vector<8x1xf32> to vector<8x32xf32>
    %56 = arith.mulf %55, %54 : vector<8x32xf32>
    %57 = vector.extract_strided_slice %14 {offsets = [0, 32], sizes = [8, 32], strides = [1, 1]} : vector<8x128xf32> to vector<8x32xf32>
    %58 = vector.broadcast %41 : vector<8x1xf32> to vector<8x32xf32>
    %59 = arith.mulf %58, %57 : vector<8x32xf32>
    %60 = arith.addf %56, %59 : vector<8x32xf32>
    %61 = vector.extract_strided_slice %14 {offsets = [0, 64], sizes = [8, 32], strides = [1, 1]} : vector<8x128xf32> to vector<8x32xf32>
    %62 = vector.broadcast %45 : vector<8x1xf32> to vector<8x32xf32>
    %63 = arith.mulf %62, %61 : vector<8x32xf32>
    %64 = arith.addf %60, %63 : vector<8x32xf32>
    %65 = vector.extract_strided_slice %14 {offsets = [0, 96], sizes = [8, 32], strides = [1, 1]} : vector<8x128xf32> to vector<8x32xf32>
    %66 = vector.broadcast %49 : vector<8x1xf32> to vector<8x32xf32>
    %67 = arith.mulf %66, %65 : vector<8x32xf32>
    %68 = arith.addf %64, %67 : vector<8x32xf32>
    %69 = vector.broadcast %53 : vector<8x1xf32> to vector<8x32xf32>
    %70 = arith.mulf %68, %69 : vector<8x32xf32>
    %c0_25 = arith.constant 0 : index
    %c0_26 = arith.constant 0 : index
    %71 = vector.load %arg4[%c0_25, %c0_26] : memref<8x32xf32, #tpu.memory_space<vmem>>, vector<8x32xf32>
    %72 = arith.addf %70, %71 : vector<8x32xf32>
    %c0_27 = arith.constant 0 : index
    %c0_28 = arith.constant 0 : index
    %73 = vector.load %arg10[%c0_27, %c0_28] : memref<8x32xf32, #tpu.memory_space<vmem>>, vector<8x32xf32>
    tpu.vector_store %arg10[%c0_27, %c0_28], %72 {strides = array<i32>} : memref<8x32xf32, #tpu.memory_space<vmem>>, vector<8x32xf32>,
    return
  }
  func.func @transform_0(%arg0: i32) -> (i32, i32) {
    %c0_i32 = arith.constant 0 : i32
    %c0_i32_0 = arith.constant 0 : i32
    return %arg0, %c0_i32 : i32, i32
  }
  func.func @transform_1(%arg0: i32) -> (i32, i32) {
    %c0_i32 = arith.constant 0 : i32
    %c0_i32_0 = arith.constant 0 : i32
    return %arg0, %c0_i32 : i32, i32
  }
  func.func @transform_2(%arg0: i32) -> (i32, i32) {
    %c0_i32 = arith.constant 0 : i32
    %c0_i32_0 = arith.constant 0 : i32
    return %arg0, %c0_i32 : i32, i32
  }
  func.func @transform_3(%arg0: i32) -> (i32, i32) {
    %c0_i32 = arith.constant 0 : i32
    %c0_i32_0 = arith.constant 0 : i32
    return %arg0, %c0_i32 : i32, i32
  }
  func.func @transform_4(%arg0: i32) -> (i32, i32) {
    %c0_i32 = arith.constant 0 : i32
    %c0_i32_0 = arith.constant 0 : i32
    %c0_i32_1 = arith.constant 0 : i32
    return %c0_i32, %c0_i32_0 : i32, i32
  }
  func.func @transform_5(%arg0: i32) -> (i32, i32) {
    %c0_i32 = arith.constant 0 : i32
    %c0_i32_0 = arith.constant 0 : i32
    %c0_i32_1 = arith.constant 0 : i32
    return %c0_i32, %c0_i32_0 : i32, i32
  }
  func.func @transform_6(%arg0: i32) -> (i32, i32) {
    %c0_i32 = arith.constant 0 : i32
    %c0_i32_0 = arith.constant 0 : i32
    %c0_i32_1 = arith.constant 0 : i32
    return %c0_i32, %c0_i32_0 : i32, i32
  }
  func.func @transform_7(%arg0: i32) -> (i32, i32) {
    %c0_i32 = arith.constant 0 : i32
    %c0_i32_0 = arith.constant 0 : i32
    %c0_i32_1 = arith.constant 0 : i32
    return %c0_i32, %c0_i32_0 : i32, i32
  }
  func.func @transform_8(%arg0: i32) -> (i32, i32) {
    %c0_i32 = arith.constant 0 : i32
    %c0_i32_0 = arith.constant 0 : i32
    %c0_i32_1 = arith.constant 0 : i32
    return %c0_i32, %c0_i32_0 : i32, i32
  }
  func.func @transform_9(%arg0: i32) -> (i32, i32) {
    %c0_i32 = arith.constant 0 : i32
    %c0_i32_0 = arith.constant 0 : i32
    return %arg0, %c0_i32 : i32, i32
  }
}

</mosaic_0001>

<llo_original>
// kernel: tpu_custom_call.1
$region0: #{tpu_custom_call.1}
  #allocation0 [shape = 'u32[]', space=smem, size = 0x4, offset = 0x4, fixed_abs, tag = 'smem constant byte address 0x4 - core index']
  #allocation1 [shape = 'u32[144,128]{1,0:T(1,128)}', space=vmem, size = 0x12000, scoped, tag = 'internal scratch']
  %s0 = inlined_call_operand.hbm [shape: bf16[16,32], index: 0, kind: input, shape index: {}]
  %s1 = inlined_call_operand.hbm [shape: bf16[16,128], index: 1, kind: input, shape index: {}]
  %s2 = inlined_call_operand.hbm [shape: bf16[16,128], index: 2, kind: input, shape index: {}]
  %s3 = inlined_call_operand.hbm [shape: f32[16,32], index: 3, kind: input, shape index: {}]
  %s4 = inlined_call_operand.hbm [shape: bf16[32,32], index: 4, kind: input, shape index: {}]
  %s5 = inlined_call_operand.vmem [shape: f32[1,32], index: 5, kind: input, shape index: {}]
  %s6 = inlined_call_operand.hbm [shape: bf16[128,128], index: 6, kind: input, shape index: {}]
  %s7 = inlined_call_operand.vmem [shape: f32[1,128], index: 7, kind: input, shape index: {}]
  %s8 = inlined_call_operand.hbm [shape: bf16[128,128], index: 8, kind: input, shape index: {}]
  %s9 = inlined_call_operand.hbm [shape: f32[16,32], index: 9, kind: output, shape index: {}]
  %s10 = sld [smem:[#allocation0]]
  $region97: #{tpu_custom_call.1} parent=0
    _
  %s12 = ssub.s32 1, %s10
  %s13 = scalar_select 0, %s12, %s10
  $region1: #{tpu_custom_call.1} parent=0
    #allocation2 [shape = 'u8[4096]{0}', space=vmem, size = 0x1000, scoped, tag = 'input window, operand 0']
    #allocation3 [shape = 's32[2]{0}', space=sflag, size = 0x8, scoped, tag = 'scoped memory for tpu_custom_call.1']
    #allocation4 [shape = 's32[2]{0}', space=sflag, size = 0x8, scoped, tag = 'scoped memory for tpu_custom_call.1']
    #allocation5 [shape = 'u8[4096]{0}', space=vmem, size = 0x1000, scoped, tag = 'input window, operand 1']
    #allocation6 [shape = 's32[2]{0}', space=sflag, size = 0x8, scoped, tag = 'scoped memory for tpu_custom_call.1']
    #allocation7 [shape = 'u8[4096]{0}', space=vmem, size = 0x1000, scoped, tag = 'input window, operand 2']
    #allocation8 [shape = 'u8[8192]{0}', space=vmem, size = 0x2000, scoped, tag = 'input window, operand 3']
    #allocation9 [shape = 's32[2]{0}', space=sflag, size = 0x8, scoped, tag = 'scoped memory for tpu_custom_call.1']
    #allocation10 [shape = 'u8[8192]{0}', space=vmem, size = 0x2000, scoped, tag = 'input window, operand 4, single buffered']
    #allocation11 [shape = 'u8[32768]{0}', space=vmem, size = 0x8000, scoped, tag = 'input window, operand 6, single buffered']
    #allocation12 [shape = 's32[1]{0}', space=sflag, size = 0x4, scoped, tag = 'scoped memory for tpu_custom_call.1']
    #allocation13 [shape = 'u8[32768]{0}', space=vmem, size = 0x8000, scoped, tag = 'input window, operand 8, single buffered']
    #allocation14 [shape = 'u8[8192]{0}', space=vmem, size = 0x2000, scoped, tag = 'output window, operand 0']
    %14 = vsyncpa [#allocation3], 0
    %s15 = scalar_lea.sflag [#allocation3], 1
    %16 = vsyncpa %s15, 0
    %17 = vsyncpa [#allocation6], 0
    %s18 = scalar_lea.sflag [#allocation6], 1
    %19 = vsyncpa %s18, 0
    %20 = vsyncpa [#allocation9], 0
    %s21 = scalar_lea.sflag [#allocation9], 1
    %22 = vsyncpa %s21, 0
    %23 = vsyncpa [#allocation12], 0
    %24 = vsyncpa [#allocation4], 0
    %s25 = scalar_lea.sflag [#allocation4], 1
    %26 = vsyncpa %s25, 0
    loop: start=0, step=1, limit=4
    $region2: #{tpu_custom_call.1} parent=1 // loop_pre_header
      _
    $region3: #{tpu_custom_call.1} parent=1 // loop_header
      %s28 = sphi 0, %s32
      %p29 = scmp.ge.s32.totalorder %s28, 4
      %s38 = sphi 0, %s40
      %s41 = sphi 0, %s38
      %s42 = sphi 0, %s41
      %s58 = sphi 0, %s42
      %s64 = sphi 0, %s66
      %s67 = sphi 0, %s64
      %s68 = sphi 0, %s67
      %s84 = sphi 0, %s68
      %s90 = sphi 0, %s92
      %s93 = sphi 0, %s90
      %s94 = sphi 0, %s93
      %s110 = sphi 0, %s94
      %s116 = sphi 0, %s118
      %s119 = sphi 0, %s116
      %s120 = sphi 0, %s119
      %s136 = sphi 0, %s120
      %s140 = sphi 0, %s140
      %s142 = sphi 0, %s140
      %s143 = sphi 0, %s142
      %s157 = sphi 0, %s143
      %s161 = sphi 0, %s161
      %s163 = sphi 0, %s161
      %s164 = sphi 0, %s163
      %s178 = sphi 0, %s164
      %s182 = sphi 0, %s182
      %s184 = sphi 0, %s182
      %s185 = sphi 0, %s184
      %s199 = sphi 0, %s185
      %s203 = sphi 0, %s203
      %s205 = sphi 0, %s203
      %s206 = sphi 0, %s205
      %s220 = sphi 0, %s206
      %s224 = sphi 0, %s224
      %s226 = sphi 0, %s224
      %s227 = sphi 0, %s226
      %s241 = sphi 0, %s227
      %s247 = sphi 0, %s249
      %s250 = sphi 0, %s247
      %s251 = sphi 0, %s250
      %s267 = sphi 0, %s251
    $region4: #{tpu_custom_call.1} parent=1 // loop_header_branch
      %31 = sbr.rel (%p29) target = $region8
    $region5: #{tpu_custom_call.1} parent=1 // loop_body
      %s33 = ssub.s32 %s28, 1
      %s34 = ssub.s32 %s28, 2
      %s35 = sadd.s32 %s28, 1
      %s36 = ssub.s32 %s28, %s35
      %p37 = scmp.eq.s32.totalorder %s36, 0
      %s39 = sadd.s32 %s38, 1
      %s40 = scalar_select %p37, %s38, %s39
      %p43 = pneg %p37
      %p44 = scmp.eq.s32.totalorder %s28, 1
      %p45 = por %p43, %p44
      %p46 = scmp.ne.s32.totalorder %s38, %s41
      %p47 = scmp.eq.s32.totalorder %s28, 0
      %p48 = por %p46, %p47
      %p49 = scmp.ne.s32.totalorder %s38, %s41
      %p50 = scmp.eq.s32.totalorder %s33, 1
      %p51 = por %p49, %p50
      %p52 = scmp.ne.s32.totalorder %s41, %s42
      %p53 = scmp.eq.s32.totalorder %s33, 0
      %p54 = por %p52, %p53
      %p55 = scmp.ne.s32.totalorder %s41, %s42
      %p56 = scmp.eq.s32.totalorder %s34, 1
      %p57 = por %p55, %p56
      %p59 = scmp.ne.s32.totalorder %s42, %s58
      %p60 = scmp.eq.s32.totalorder %s34, 0
      %p61 = por %p59, %p60
      %s62 = ssub.s32 %s28, %s35
      %p63 = scmp.eq.s32.totalorder %s62, 0
      %s65 = sadd.s32 %s64, 1
      %s66 = scalar_select %p63, %s64, %s65
      %p69 = pneg %p63
      %p70 = scmp.eq.s32.totalorder %s28, 1
      %p71 = por %p69, %p70
      %p72 = scmp.ne.s32.totalorder %s64, %s67
      %p73 = scmp.eq.s32.totalorder %s28, 0
      %p74 = por %p72, %p73
      %p75 = scmp.ne.s32.totalorder %s64, %s67
      %p76 = scmp.eq.s32.totalorder %s33, 1
      %p77 = por %p75, %p76
      %p78 = scmp.ne.s32.totalorder %s67, %s68
      %p79 = scmp.eq.s32.totalorder %s33, 0
      %p80 = por %p78, %p79
      %p81 = scmp.ne.s32.totalorder %s67, %s68
      %p82 = scmp.eq.s32.totalorder %s34, 1
      %p83 = por %p81, %p82
      %p85 = scmp.ne.s32.totalorder %s68, %s84
      %p86 = scmp.eq.s32.totalorder %s34, 0
      %p87 = por %p85, %p86
      %s88 = ssub.s32 %s28, %s35
      %p89 = scmp.eq.s32.totalorder %s88, 0
      %s91 = sadd.s32 %s90, 1
      %s92 = scalar_select %p89, %s90, %s91
      %p95 = pneg %p89
      %p96 = scmp.eq.s32.totalorder %s28, 1
      %p97 = por %p95, %p96
      %p98 = scmp.ne.s32.totalorder %s90, %s93
      %p99 = scmp.eq.s32.totalorder %s28, 0
      %p100 = por %p98, %p99
      %p101 = scmp.ne.s32.totalorder %s90, %s93
      %p102 = scmp.eq.s32.totalorder %s33, 1
      %p103 = por %p101, %p102
      %p104 = scmp.ne.s32.totalorder %s93, %s94
      %p105 = scmp.eq.s32.totalorder %s33, 0
      %p106 = por %p104, %p105
      %p107 = scmp.ne.s32.totalorder %s93, %s94
      %p108 = scmp.eq.s32.totalorder %s34, 1
      %p109 = por %p107, %p108
      %p111 = scmp.ne.s32.totalorder %s94, %s110
      %p112 = scmp.eq.s32.totalorder %s34, 0
      %p113 = por %p111, %p112
      %s114 = ssub.s32 %s28, %s35
      %p115 = scmp.eq.s32.totalorder %s114, 0
      %s117 = sadd.s32 %s116, 1
      %s118 = scalar_select %p115, %s116, %s117
      %p121 = pneg %p115
      %p122 = scmp.eq.s32.totalorder %s28, 1
      %p123 = por %p121, %p122
      %p124 = scmp.ne.s32.totalorder %s116, %s119
      %p125 = scmp.eq.s32.totalorder %s28, 0
      %p126 = por %p124, %p125
      %p127 = scmp.ne.s32.totalorder %s116, %s119
      %p128 = scmp.eq.s32.totalorder %s33, 1
      %p129 = por %p127, %p128
      %p130 = scmp.ne.s32.totalorder %s119, %s120
      %p131 = scmp.eq.s32.totalorder %s33, 0
      %p132 = por %p130, %p131
      %p133 = scmp.ne.s32.totalorder %s119, %s120
      %p134 = scmp.eq.s32.totalorder %s34, 1
      %p135 = por %p133, %p134
      %p137 = scmp.ne.s32.totalorder %s120, %s136
      %p138 = scmp.eq.s32.totalorder %s34, 0
      %p139 = por %p137, %p138
      %s141 = sadd.s32 %s140, 1
      %p144 = scmp.eq.s32.totalorder %s28, 1
      %p145 = scmp.ne.s32.totalorder %s140, %s142
      %p146 = scmp.eq.s32.totalorder %s28, 0
      %p147 = por %p145, %p146
      %p148 = scmp.ne.s32.totalorder %s140, %s142
      %p149 = scmp.eq.s32.totalorder %s33, 1
      %p150 = por %p148, %p149
      %p151 = scmp.ne.s32.totalorder %s142, %s143
      %p152 = scmp.eq.s32.totalorder %s33, 0
      %p153 = por %p151, %p152
      %p154 = scmp.ne.s32.totalorder %s142, %s143
      %p155 = scmp.eq.s32.totalorder %s34, 1
      %p156 = por %p154, %p155
      %p158 = scmp.ne.s32.totalorder %s143, %s157
      %p159 = scmp.eq.s32.totalorder %s34, 0
      %p160 = por %p158, %p159
      %s162 = sadd.s32 %s161, 1
      %p165 = scmp.eq.s32.totalorder %s28, 1
      %p166 = scmp.ne.s32.totalorder %s161, %s163
      %p167 = scmp.eq.s32.totalorder %s28, 0
      %p168 = por %p166, %p167
      %p169 = scmp.ne.s32.totalorder %s161, %s163
      %p170 = scmp.eq.s32.totalorder %s33, 1
      %p171 = por %p169, %p170
      %p172 = scmp.ne.s32.totalorder %s163, %s164
      %p173 = scmp.eq.s32.totalorder %s33, 0
      %p174 = por %p172, %p173
      %p175 = scmp.ne.s32.totalorder %s163, %s164
      %p176 = scmp.eq.s32.totalorder %s34, 1
      %p177 = por %p175, %p176
      %p179 = scmp.ne.s32.totalorder %s164, %s178
      %p180 = scmp.eq.s32.totalorder %s34, 0
      %p181 = por %p179, %p180
      %s183 = sadd.s32 %s182, 1
      %p186 = scmp.eq.s32.totalorder %s28, 1
      %p187 = scmp.ne.s32.totalorder %s182, %s184
      %p188 = scmp.eq.s32.totalorder %s28, 0
      %p189 = por %p187, %p188
      %p190 = scmp.ne.s32.totalorder %s182, %s184
      %p191 = scmp.eq.s32.totalorder %s33, 1
      %p192 = por %p190, %p191
      %p193 = scmp.ne.s32.totalorder %s184, %s185
      %p194 = scmp.eq.s32.totalorder %s33, 0
      %p195 = por %p193, %p194
      %p196 = scmp.ne.s32.totalorder %s184, %s185
      %p197 = scmp.eq.s32.totalorder %s34, 1
      %p198 = por %p196, %p197
      %p200 = scmp.ne.s32.totalorder %s185, %s199
      %p201 = scmp.eq.s32.totalorder %s34, 0
      %p202 = por %p200, %p201
      %s204 = sadd.s32 %s203, 1
      %p207 = scmp.eq.s32.totalorder %s28, 1
      %p208 = scmp.ne.s32.totalorder %s203, %s205
      %p209 = scmp.eq.s32.totalorder %s28, 0
      %p210 = por %p208, %p209
      %p211 = scmp.ne.s32.totalorder %s203, %s205
      %p212 = scmp.eq.s32.totalorder %s33, 1
      %p213 = por %p211, %p212
      %p214 = scmp.ne.s32.totalorder %s205, %s206
      %p215 = scmp.eq.s32.totalorder %s33, 0
      %p216 = por %p214, %p215
      %p217 = scmp.ne.s32.totalorder %s205, %s206
      %p218 = scmp.eq.s32.totalorder %s34, 1
      %p219 = por %p217, %p218
      %p221 = scmp.ne.s32.totalorder %s206, %s220
      %p222 = scmp.eq.s32.totalorder %s34, 0
      %p223 = por %p221, %p222
      %s225 = sadd.s32 %s224, 1
      %p228 = scmp.eq.s32.totalorder %s28, 1
      %p229 = scmp.ne.s32.totalorder %s224, %s226
      %p230 = scmp.eq.s32.totalorder %s28, 0
      %p231 = por %p229, %p230
      %p232 = scmp.ne.s32.totalorder %s224, %s226
      %p233 = scmp.eq.s32.totalorder %s33, 1
      %p234 = por %p232, %p233
      %p235 = scmp.ne.s32.totalorder %s226, %s227
      %p236 = scmp.eq.s32.totalorder %s33, 0
      %p237 = por %p235, %p236
      %p238 = scmp.ne.s32.totalorder %s226, %s227
      %p239 = scmp.eq.s32.totalorder %s34, 1
      %p240 = por %p238, %p239
      %p242 = scmp.ne.s32.totalorder %s227, %s241
      %p243 = scmp.eq.s32.totalorder %s34, 0
      %p244 = por %p242, %p243
      %s245 = ssub.s32 %s28, %s35
      %p246 = scmp.eq.s32.totalorder %s245, 0
      %s248 = sadd.s32 %s247, 1
      %s249 = scalar_select %p246, %s247, %s248
      %p252 = pneg %p246
      %p253 = scmp.eq.s32.totalorder %s28, 1
      %p254 = por %p252, %p253
      %p255 = scmp.ne.s32.totalorder %s247, %s250
      %p256 = scmp.eq.s32.totalorder %s28, 0
      %p257 = por %p255, %p256
      %p258 = scmp.ne.s32.totalorder %s247, %s250
      %p259 = scmp.eq.s32.totalorder %s33, 1
      %p260 = por %p258, %p259
      %p261 = scmp.ne.s32.totalorder %s250, %s251
      %p262 = scmp.eq.s32.totalorder %s33, 0
      %p263 = por %p261, %p262
      %p264 = scmp.ne.s32.totalorder %s250, %s251
      %p265 = scmp.eq.s32.totalorder %s34, 1
      %p266 = por %p264, %p265
      %p268 = scmp.ne.s32.totalorder %s251, %s267
      %p269 = scmp.eq.s32.totalorder %s34, 0
      %p270 = por %p268, %p269
      %p271 = scmp.le.s32.totalorder 1, %s28
      %p272 = scmp.lt.s32.totalorder %s28, 3
      %p273 = pnand %p271, %p272
      %p274 = pneg %p273
      // Predicated region
      $region9: #{tpu_custom_call.1} parent=5 // pred_check
        _
      $region10: #{tpu_custom_call.1} parent=5 // pred_check_branch
        %276 = sbr.rel (%p273) target = $region12
      $region11: #{tpu_custom_call.1} parent=5 // pred_region
        %s277 = ssub.s32 %s28, 1
        // Predicated region
        $region13: #{tpu_custom_call.1} parent=11 // pred_check
          %p278 = pneg %p153
        $region14: #{tpu_custom_call.1} parent=11 // pred_check_branch
          %280 = sbr.rel (%p278) target = $region16
        $region15: #{tpu_custom_call.1} parent=11 // pred_region
          %s282 = ssub.s32 256, 256
          %283 = vsyncadd [#allocation9], %s282
          %s284 = sshll.u32 [#allocation10], 4
          %s285 = int_to_ptr.vmem [resolvable:$true] %s284
          %290 = dma.hbm_to_vmem [thread:$0]  %s4, 256, %s285, [#allocation9], 64, 64, 4
        $region16: #{tpu_custom_call.1} parent=11 // pred_fallthru
          _
        // Predicated region
        $region17: #{tpu_custom_call.1} parent=11 // pred_check
          %p291 = pneg %p174
        $region18: #{tpu_custom_call.1} parent=11 // pred_check_branch
          %293 = sbr.rel (%p291) target = $region20
        $region19: #{tpu_custom_call.1} parent=11 // pred_region
          _
        $region20: #{tpu_custom_call.1} parent=11 // pred_fallthru
          _
        // Predicated region
        $region21: #{tpu_custom_call.1} parent=11 // pred_check
          %p294 = pneg %p195
        $region22: #{tpu_custom_call.1} parent=11 // pred_check_branch
          %296 = sbr.rel (%p294) target = $region24
        $region23: #{tpu_custom_call.1} parent=11 // pred_region
          %s298 = ssub.s32 1024, 1024
          %299 = vsyncadd [#allocation12], %s298
          %s300 = sshll.u32 [#allocation11], 4
          %s301 = int_to_ptr.vmem [resolvable:$true] %s300
          %306 = dma.hbm_to_vmem [thread:$0]  %s6, 1024, %s301, [#allocation12], 64, 64, 4
        $region24: #{tpu_custom_call.1} parent=11 // pred_fallthru
          _
        // Predicated region
        $region25: #{tpu_custom_call.1} parent=11 // pred_check
          %p307 = pneg %p216
        $region26: #{tpu_custom_call.1} parent=11 // pred_check_branch
          %309 = sbr.rel (%p307) target = $region28
        $region27: #{tpu_custom_call.1} parent=11 // pred_region
          _
        $region28: #{tpu_custom_call.1} parent=11 // pred_fallthru
          _
        // Predicated region
        $region29: #{tpu_custom_call.1} parent=11 // pred_check
          %p310 = pneg %p237
        $region30: #{tpu_custom_call.1} parent=11 // pred_check_branch
          %312 = sbr.rel (%p310) target = $region32
        $region31: #{tpu_custom_call.1} parent=11 // pred_region
          %s314 = ssub.s32 1024, 1024
          %315 = vsyncadd [#allocation12], %s314
          %s316 = sshll.u32 [#allocation13], 4
          %s317 = int_to_ptr.vmem [resolvable:$true] %s316
          %322 = dma.hbm_to_vmem [thread:$0]  %s8, 1024, %s317, [#allocation12], 64, 64, 4
        $region32: #{tpu_custom_call.1} parent=11 // pred_fallthru
          _
      $region12: #{tpu_custom_call.1} parent=5 // pred_fallthru
        _
      %p323 = scmp.lt.s32.totalorder %s28, 2
      // Predicated region
      $region33: #{tpu_custom_call.1} parent=5 // pred_check
        %p324 = pneg %p323
      $region34: #{tpu_custom_call.1} parent=5 // pred_check_branch
        %326 = sbr.rel (%p324) target = $region36
      $region35: #{tpu_custom_call.1} parent=5 // pred_region
        // Predicated region
        $region37: #{tpu_custom_call.1} parent=35 // pred_check
          %p327 = pneg %p48
        $region38: #{tpu_custom_call.1} parent=35 // pred_check_branch
          %329 = sbr.rel (%p327) target = $region40
        $region39: #{tpu_custom_call.1} parent=35 // pred_region
          %s330 = sand.u32 %s38, 1
          %s331 = scalar_lea.sflag [#allocation3], %s330
          %s332 = sand.u32 %s38, 1
          %s333 = smul.addr %s332, 4
          %s334 = scalar_lea.vmem [#allocation2], %s333
          %s336 = ssub.s32 64, 64
          %337 = vsyncadd %s331, %s336
          %s338 = smul.addr %s28, 64
          %s339 = scalar_lea.hbm %s0, %s338
          %s341 = sshll.u32 %s334, 4
          %s342 = int_to_ptr.vmem [resolvable:$true] %s341
          %344 = dma.hbm_to_vmem [thread:$0]  %s339, 64, %s342, %s331
        $region40: #{tpu_custom_call.1} parent=35 // pred_fallthru
          _
        // Predicated region
        $region41: #{tpu_custom_call.1} parent=35 // pred_check
          %p345 = pneg %p74
        $region42: #{tpu_custom_call.1} parent=35 // pred_check_branch
          %347 = sbr.rel (%p345) target = $region44
        $region43: #{tpu_custom_call.1} parent=35 // pred_region
          %s348 = sand.u32 %s28, 1
          %s349 = scalar_lea.sflag [#allocation6], %s348
          %s350 = sand.u32 %s64, 1
          %s351 = smul.addr %s350, 4
          %s352 = scalar_lea.vmem [#allocation5], %s351
          %s354 = ssub.s32 64, 64
          %355 = vsyncadd %s349, %s354
          %s356 = smul.addr %s28, 64
          %s357 = scalar_lea.hbm %s1, %s356
          %s359 = sshll.u32 %s352, 4
          %s360 = int_to_ptr.vmem [resolvable:$true] %s359
          %362 = dma.hbm_to_vmem [thread:$0]  %s357, 64, %s360, %s349
        $region44: #{tpu_custom_call.1} parent=35 // pred_fallthru
          _
        // Predicated region
        $region45: #{tpu_custom_call.1} parent=35 // pred_check
          %p363 = pneg %p100
        $region46: #{tpu_custom_call.1} parent=35 // pred_check_branch
          %365 = sbr.rel (%p363) target = $region48
        $region47: #{tpu_custom_call.1} parent=35 // pred_region
          %s366 = sand.u32 %s28, 1
          %s367 = scalar_lea.sflag [#allocation6], %s366
          %s368 = sand.u32 %s90, 1
          %s369 = smul.addr %s368, 4
          %s370 = scalar_lea.vmem [#allocation7], %s369
          %s372 = ssub.s32 64, 64
          %373 = vsyncadd %s367, %s372
          %s374 = smul.addr %s28, 64
          %s375 = scalar_lea.hbm %s2, %s374
          %s377 = sshll.u32 %s370, 4
          %s378 = int_to_ptr.vmem [resolvable:$true] %s377
          %380 = dma.hbm_to_vmem [thread:$0]  %s375, 64, %s378, %s367
        $region48: #{tpu_custom_call.1} parent=35 // pred_fallthru
          _
        // Predicated region
        $region49: #{tpu_custom_call.1} parent=35 // pred_check
          %p381 = pneg %p126
        $region50: #{tpu_custom_call.1} parent=35 // pred_check_branch
          %383 = sbr.rel (%p381) target = $region52
        $region51: #{tpu_custom_call.1} parent=35 // pred_region
          %s384 = sand.u32 %s28, 1
          %s385 = scalar_lea.sflag [#allocation9], %s384
          %s386 = sand.u32 %s116, 1
          %s387 = smul.addr %s386, 8
          %s388 = scalar_lea.vmem [#allocation8], %s387
          %s390 = ssub.s32 128, 128
          %391 = vsyncadd %s385, %s390
          %s392 = smul.addr %s28, 128
          %s393 = scalar_lea.hbm %s3, %s392
          %s395 = sshll.u32 %s388, 4
          %s396 = int_to_ptr.vmem [resolvable:$true] %s395
          %398 = dma.hbm_to_vmem [thread:$0]  %s393, 128, %s396, %s385
        $region52: #{tpu_custom_call.1} parent=35 // pred_fallthru
          _
      $region36: #{tpu_custom_call.1} parent=5 // pred_fallthru
        _
      %p399 = scmp.le.s32.totalorder 1, %s28
      %p400 = scmp.lt.s32.totalorder %s28, 3
      %p401 = pnand %p399, %p400
      %p402 = pneg %p401
      // Predicated region
      $region53: #{tpu_custom_call.1} parent=5 // pred_check
        _
      $region54: #{tpu_custom_call.1} parent=5 // pred_check_branch
        %404 = sbr.rel (%p401) target = $region56
      $region55: #{tpu_custom_call.1} parent=5 // pred_region
        %s405 = ssub.s32 %s28, 1
        %s406 = sand.u32 %s41, 1
        %s407 = scalar_lea.sflag [#allocation3], %s406
        %s408 = sand.u32 %s41, 1
        %s409 = smul.addr %s408, 4
        %s410 = scalar_lea.vmem [#allocation2], %s409
        // Predicated region
        $region57: #{tpu_custom_call.1} parent=55 // pred_check
          %p411 = pneg %p54
        $region58: #{tpu_custom_call.1} parent=55 // pred_check_branch
          %413 = sbr.rel (%p411) target = $region60
        $region59: #{tpu_custom_call.1} parent=55 // pred_region
          %414 = dma.done %s407, 64
        $region60: #{tpu_custom_call.1} parent=55 // pred_fallthru
          _
        %s415 = sand.u32 %s33, 1
        %s416 = scalar_lea.sflag [#allocation6], %s415
        %s417 = sand.u32 %s67, 1
        %s418 = smul.addr %s417, 4
        %s419 = scalar_lea.vmem [#allocation5], %s418
        // Predicated region
        $region61: #{tpu_custom_call.1} parent=55 // pred_check
          %p420 = pneg %p80
        $region62: #{tpu_custom_call.1} parent=55 // pred_check_branch
          %422 = sbr.rel (%p420) target = $region64
        $region63: #{tpu_custom_call.1} parent=55 // pred_region
          %423 = dma.done %s416, 64
        $region64: #{tpu_custom_call.1} parent=55 // pred_fallthru
          _
        %s424 = sand.u32 %s33, 1
        %s425 = scalar_lea.sflag [#allocation6], %s424
        %s426 = sand.u32 %s93, 1
        %s427 = smul.addr %s426, 4
        %s428 = scalar_lea.vmem [#allocation7], %s427
        // Predicated region
        $region65: #{tpu_custom_call.1} parent=55 // pred_check
          %p429 = pneg %p106
        $region66: #{tpu_custom_call.1} parent=55 // pred_check_branch
          %431 = sbr.rel (%p429) target = $region68
        $region67: #{tpu_custom_call.1} parent=55 // pred_region
          %432 = dma.done %s425, 64
        $region68: #{tpu_custom_call.1} parent=55 // pred_fallthru
          _
        %s433 = sand.u32 %s33, 1
        %s434 = scalar_lea.sflag [#allocation9], %s433
        %s435 = sand.u32 %s119, 1
        %s436 = smul.addr %s435, 8
        %s437 = scalar_lea.vmem [#allocation8], %s436
        // Predicated region
        $region69: #{tpu_custom_call.1} parent=55 // pred_check
          %p438 = pneg %p132
        $region70: #{tpu_custom_call.1} parent=55 // pred_check_branch
          %440 = sbr.rel (%p438) target = $region72
        $region71: #{tpu_custom_call.1} parent=55 // pred_region
          %441 = dma.done %s434, 128
        $region72: #{tpu_custom_call.1} parent=55 // pred_fallthru
          _
        // Predicated region
        $region73: #{tpu_custom_call.1} parent=55 // pred_check
          %p442 = pneg %p153
        $region74: #{tpu_custom_call.1} parent=55 // pred_check_branch
          %444 = sbr.rel (%p442) target = $region76
        $region75: #{tpu_custom_call.1} parent=55 // pred_region
          %445 = dma.done [#allocation9], 256
        $region76: #{tpu_custom_call.1} parent=55 // pred_fallthru
          _
        // Predicated region
        $region77: #{tpu_custom_call.1} parent=55 // pred_check
          %p446 = pneg %p195
        $region78: #{tpu_custom_call.1} parent=55 // pred_check_branch
          %448 = sbr.rel (%p446) target = $region80
        $region79: #{tpu_custom_call.1} parent=55 // pred_region
          %449 = dma.done [#allocation12], 1024
        $region80: #{tpu_custom_call.1} parent=55 // pred_fallthru
          _
        // Predicated region
        $region81: #{tpu_custom_call.1} parent=55 // pred_check
          %p450 = pneg %p237
        $region82: #{tpu_custom_call.1} parent=55 // pred_check_branch
          %452 = sbr.rel (%p450) target = $region84
        $region83: #{tpu_custom_call.1} parent=55 // pred_region
          %453 = dma.done [#allocation12], 1024
        $region84: #{tpu_custom_call.1} parent=55 // pred_fallthru
          _
        %s454 = sand.u32 %s41, 1
        %s455 = scalar_lea.sflag [#allocation3], %s454
        %s456 = sand.u32 %s41, 1
        %s457 = smul.addr %s456, 4
        %s458 = scalar_lea.vmem [#allocation2], %s457
        %p459 = pneg %p54
        %p460 = pneg %p51
        %s461 = sand.u32 %s33, 1
        %s462 = scalar_lea.sflag [#allocation6], %s461
        %s463 = sand.u32 %s67, 1
        %s464 = smul.addr %s463, 4
        %s465 = scalar_lea.vmem [#allocation5], %s464
        %p466 = pneg %p80
        %p467 = pneg %p77
        %s468 = sand.u32 %s33, 1
        %s469 = scalar_lea.sflag [#allocation6], %s468
        %s470 = sand.u32 %s93, 1
        %s471 = smul.addr %s470, 4
        %s472 = scalar_lea.vmem [#allocation7], %s471
        %p473 = pneg %p106
        %p474 = pneg %p103
        %s475 = sand.u32 %s33, 1
        %s476 = scalar_lea.sflag [#allocation9], %s475
        %s477 = sand.u32 %s119, 1
        %s478 = smul.addr %s477, 8
        %s479 = scalar_lea.vmem [#allocation8], %s478
        %p480 = pneg %p132
        %p481 = pneg %p129
        %p482 = pneg %p153
        %p483 = pneg %p150
        %p484 = pneg %p174
        %p485 = pneg %p171
        %p486 = pneg %p195
        %p487 = pneg %p192
        %p488 = pneg %p216
        %p489 = pneg %p213
        %p490 = pneg %p237
        %p491 = pneg %p234
        %p492 = pneg %p263
        %p493 = pneg %p260
        %s494 = sand.u32 %s250, 1
        %s495 = scalar_lea.sflag [#allocation4], %s494
        %s496 = sand.u32 %s250, 1
        %s497 = smul.addr %s496, 8
        %s498 = scalar_lea.vmem [#allocation14], %s497
        %v500 = vld [vmem:[%s410] sm:$0xf]
        %v501 = vld [vmem:[#allocation10] sm:$0xf]
        %v502 = vld [vmem:[#allocation10 + $0x4] sm:$0xf]
        %v503 = vld [vmem:[#allocation10 + $0x8] sm:$0xf]
        %v504 = vld [vmem:[#allocation10 + $0xc] sm:$0xf]
        %v505 = vld [vmem:[%s5] sm:$0x1]
        %v507 = vlaneseq
        %v508 = vshrl.u32 %v507, 7
        %v509 = vsub.s32 0, %v508
        %v510 = vrot.slane %v505, %v509
        %v516 = vunpack.c.l.b16 %v501
        %v517 = vunpack.c.l.b16 %v502
        %v518 = vunpack.c.l.b16 %v503
        %v519 = vunpack.c.l.b16 %v504
        %v520 = vpack.c.b16 %v517, %v516
        %v521 = vpack.c.b16 %v519, %v518
        %vm524 = vcmask 261120
        %v526 = vsel %vm524, %v500, 0
        %528 = vmatprep.subr.bf16.mxu0 0
        %529 = vmatpush1.bf16.msra.mxu0 %v520
        %530 = vmatprep.subr.bf16.mxu0 0
        %531 = vmatpush1.bf16.msra.mxu0 %v521
        %532 = vmatprep.subr.bf16.mxu0 0
        %533 = vmatpush1.bf16.msra.mxu0 0
        %534 = vmatprep.subr.bf16.mxu0 0
        %535 = vmatpush1.bf16.msra.mxu0 0
        %536 = vmatprep.subr.bf16.mxu0 0
        %537 = vmatpush1.bf16.msra.mxu0 0
        %538 = vmatprep.subr.bf16.mxu0 0
        %539 = vmatpush1.bf16.msra.mxu0 0
        %540 = vmatprep.subr.bf16.mxu0 0
        %541 = vmatpush1.bf16.msra.mxu0 0
        %542 = vmatprep.subr.bf16.mxu0 0
        %543 = vmatpush1.bf16.msra.mxu0 0
        %544 = vmatprep.subr.bf16.mxu0 0
        %545 = vmatpush1.bf16.msra.mxu0 0
        %546 = vmatprep.subr.bf16.mxu0 0
        %547 = vmatpush1.bf16.msra.mxu0 0
        %548 = vmatprep.subr.bf16.mxu0 0
        %549 = vmatpush1.bf16.msra.mxu0 0
        %550 = vmatprep.subr.bf16.mxu0 0
        %551 = vmatpush1.bf16.msra.mxu0 0
        %552 = vmatprep.subr.bf16.mxu0 0
        %553 = vmatpush1.bf16.msra.mxu0 0
        %554 = vmatprep.subr.bf16.mxu0 0
        %555 = vmatpush1.bf16.msra.mxu0 0
        %556 = vmatprep.subr.bf16.mxu0 0
        %557 = vmatpush1.bf16.msra.mxu0 0
        %558 = vmatprep.subr.bf16.mxu0 0
        %559 = vmatpush1.bf16.msra.mxu0 0
        %560 = vmatprep.mubr.bf16.mxu0 0
        %561 = vmatmul.mubr.bf16.gmra.mrb[0].mxu0 %v526
        %v562 = vpop.f32.mrb[0].mxu0
        %v563 = vadd.f32 %v510, %v562
        %v564 = vpop.f32.mrb[0].mxu0
        %v565 = vpop.f32.mrb[0].mxu0
        %v566 = vpop.f32.mrb[0].mxu0
        %567 = vdwg.mxu0
        %v568 = vld [vmem:[%s419] sm:$0xf]
        %v569 = vld [vmem:[#allocation11] sm:$0xf]
        %v570 = vld [vmem:[#allocation11 + $0x4] sm:$0xf]
        %v571 = vld [vmem:[#allocation11 + $0x8] sm:$0xf]
        %v572 = vld [vmem:[#allocation11 + $0xc] sm:$0xf]
        %v573 = vld [vmem:[#allocation11 + $0x10] sm:$0xf]
        %v574 = vld [vmem:[#allocation11 + $0x14] sm:$0xf]
        %v575 = vld [vmem:[#allocation11 + $0x18] sm:$0xf]
        %v576 = vld [vmem:[#allocation11 + $0x1c] sm:$0xf]
        %v577 = vld [vmem:[#allocation11 + $0x20] sm:$0xf]
        %v578 = vld [vmem:[#allocation11 + $0x24] sm:$0xf]
        %v579 = vld [vmem:[#allocation11 + $0x28] sm:$0xf]
        %v580 = vld [vmem:[#allocation11 + $0x2c] sm:$0xf]
        %v581 = vld [vmem:[#allocation11 + $0x30] sm:$0xf]
        %v582 = vld [vmem:[#allocation11 + $0x34] sm:$0xf]
        %v583 = vld [vmem:[#allocation11 + $0x38] sm:$0xf]
        %v584 = vld [vmem:[#allocation11 + $0x3c] sm:$0xf]
        %v585 = vld [vmem:[%s7] sm:$0x1]
        %v587 = vlaneseq
        %v588 = vshrl.u32 %v587, 7
        %v589 = vsub.s32 0, %v588
        %v590 = vrot.slane %v585, %v589
        %v608 = vunpack.c.l.b16 %v569
        %v609 = vunpack.c.l.b16 %v570
        %v610 = vunpack.c.l.b16 %v571
        %v611 = vunpack.c.l.b16 %v572
        %v612 = vunpack.c.l.b16 %v573
        %v613 = vunpack.c.l.b16 %v574
        %v614 = vunpack.c.l.b16 %v575
        %v615 = vunpack.c.l.b16 %v576
        %v616 = vunpack.c.l.b16 %v577
        %v617 = vunpack.c.l.b16 %v578
        %v618 = vunpack.c.l.b16 %v579
        %v619 = vunpack.c.l.b16 %v580
        %v620 = vunpack.c.l.b16 %v581
        %v621 = vunpack.c.l.b16 %v582
        %v622 = vunpack.c.l.b16 %v583
        %v623 = vunpack.c.l.b16 %v584
        %v624 = vpack.c.b16 %v609, %v608
        %v625 = vpack.c.b16 %v611, %v610
        %v626 = vpack.c.b16 %v613, %v612
        %v627 = vpack.c.b16 %v615, %v614
        %v628 = vpack.c.b16 %v617, %v616
        %v629 = vpack.c.b16 %v619, %v618
        %v630 = vpack.c.b16 %v621, %v620
        %v631 = vpack.c.b16 %v623, %v622
        %640 = vmatprep.subr.bf16.mxu0 0
        %641 = vmatpush1.bf16.msra.mxu0 %v624
        %642 = vmatprep.subr.bf16.mxu0 0
        %643 = vmatpush1.bf16.msra.mxu0 %v625
        %644 = vmatprep.subr.bf16.mxu0 0
        %645 = vmatpush1.bf16.msra.mxu0 %v626
        %646 = vmatprep.subr.bf16.mxu0 0
        %647 = vmatpush1.bf16.msra.mxu0 %v627
        %648 = vmatprep.subr.bf16.mxu0 0
        %649 = vmatpush1.bf16.msra.mxu0 %v628
        %650 = vmatprep.subr.bf16.mxu0 0
        %651 = vmatpush1.bf16.msra.mxu0 %v629
        %652 = vmatprep.subr.bf16.mxu0 0
        %653 = vmatpush1.bf16.msra.mxu0 %v630
        %654 = vmatprep.subr.bf16.mxu0 0
        %655 = vmatpush1.bf16.msra.mxu0 %v631
        %656 = vmatprep.subr.bf16.mxu0 0
        %657 = vmatpush1.bf16.msra.mxu0 0
        %658 = vmatprep.subr.bf16.mxu0 0
        %659 = vmatpush1.bf16.msra.mxu0 0
        %660 = vmatprep.subr.bf16.mxu0 0
        %661 = vmatpush1.bf16.msra.mxu0 0
        %662 = vmatprep.subr.bf16.mxu0 0
        %663 = vmatpush1.bf16.msra.mxu0 0
        %664 = vmatprep.subr.bf16.mxu0 0
        %665 = vmatpush1.bf16.msra.mxu0 0
        %666 = vmatprep.subr.bf16.mxu0 0
        %667 = vmatpush1.bf16.msra.mxu0 0
        %668 = vmatprep.subr.bf16.mxu0 0
        %669 = vmatpush1.bf16.msra.mxu0 0
        %670 = vmatprep.subr.bf16.mxu0 0
        %671 = vmatpush1.bf16.msra.mxu0 0
        %672 = vmatprep.mubr.bf16.mxu0 0
        %673 = vmatmul.mubr.bf16.gmra.mrb[0].mxu0 %v568
        %v674 = vpop.f32.mrb[0].mxu0
        %v675 = vadd.f32 %v590, %v674
        %v676 = vpop.f32.mrb[0].mxu0
        %v677 = vpop.f32.mrb[0].mxu0
        %v678 = vpop.f32.mrb[0].mxu0
        %679 = vdwg.mxu0
        %v680 = vld [vmem:[%s428] sm:$0xf]
        %v681 = vld [vmem:[#allocation13] sm:$0xf]
        %v682 = vld [vmem:[#allocation13 + $0x4] sm:$0xf]
        %v683 = vld [vmem:[#allocation13 + $0x8] sm:$0xf]
        %v684 = vld [vmem:[#allocation13 + $0xc] sm:$0xf]
        %v685 = vld [vmem:[#allocation13 + $0x10] sm:$0xf]
        %v686 = vld [vmem:[#allocation13 + $0x14] sm:$0xf]
        %v687 = vld [vmem:[#allocation13 + $0x18] sm:$0xf]
        %v688 = vld [vmem:[#allocation13 + $0x1c] sm:$0xf]
        %v689 = vld [vmem:[#allocation13 + $0x20] sm:$0xf]
        %v690 = vld [vmem:[#allocation13 + $0x24] sm:$0xf]
        %v691 = vld [vmem:[#allocation13 + $0x28] sm:$0xf]
        %v692 = vld [vmem:[#allocation13 + $0x2c] sm:$0xf]
        %v693 = vld [vmem:[#allocation13 + $0x30] sm:$0xf]
        %v694 = vld [vmem:[#allocation13 + $0x34] sm:$0xf]
        %v695 = vld [vmem:[#allocation13 + $0x38] sm:$0xf]
        %v696 = vld [vmem:[#allocation13 + $0x3c] sm:$0xf]
        %v713 = vunpack.c.l.b16 %v681
        %v714 = vunpack.c.l.b16 %v682
        %v715 = vunpack.c.l.b16 %v683
        %v716 = vunpack.c.l.b16 %v684
        %v717 = vunpack.c.l.b16 %v685
        %v718 = vunpack.c.l.b16 %v686
        %v719 = vunpack.c.l.b16 %v687
        %v720 = vunpack.c.l.b16 %v688
        %v721 = vunpack.c.l.b16 %v689
        %v722 = vunpack.c.l.b16 %v690
        %v723 = vunpack.c.l.b16 %v691
        %v724 = vunpack.c.l.b16 %v692
        %v725 = vunpack.c.l.b16 %v693
        %v726 = vunpack.c.l.b16 %v694
        %v727 = vunpack.c.l.b16 %v695
        %v728 = vunpack.c.l.b16 %v696
        %v729 = vpack.c.b16 %v714, %v713
        %v730 = vpack.c.b16 %v716, %v715
        %v731 = vpack.c.b16 %v718, %v717
        %v732 = vpack.c.b16 %v720, %v719
        %v733 = vpack.c.b16 %v722, %v721
        %v734 = vpack.c.b16 %v724, %v723
        %v735 = vpack.c.b16 %v726, %v725
        %v736 = vpack.c.b16 %v728, %v727
        %745 = vmatprep.subr.bf16.mxu0 0
        %746 = vmatpush1.bf16.msra.mxu0 %v729
        %747 = vmatprep.subr.bf16.mxu0 0
        %748 = vmatpush1.bf16.msra.mxu0 %v730
        %749 = vmatprep.subr.bf16.mxu0 0
        %750 = vmatpush1.bf16.msra.mxu0 %v731
        %751 = vmatprep.subr.bf16.mxu0 0
        %752 = vmatpush1.bf16.msra.mxu0 %v732
        %753 = vmatprep.subr.bf16.mxu0 0
        %754 = vmatpush1.bf16.msra.mxu0 %v733
        %755 = vmatprep.subr.bf16.mxu0 0
        %756 = vmatpush1.bf16.msra.mxu0 %v734
        %757 = vmatprep.subr.bf16.mxu0 0
        %758 = vmatpush1.bf16.msra.mxu0 %v735
        %759 = vmatprep.subr.bf16.mxu0 0
        %760 = vmatpush1.bf16.msra.mxu0 %v736
        %761 = vmatprep.subr.bf16.mxu0 0
        %762 = vmatpush1.bf16.msra.mxu0 0
        %763 = vmatprep.subr.bf16.mxu0 0
        %764 = vmatpush1.bf16.msra.mxu0 0
        %765 = vmatprep.subr.bf16.mxu0 0
        %766 = vmatpush1.bf16.msra.mxu0 0
        %767 = vmatprep.subr.bf16.mxu0 0
        %768 = vmatpush1.bf16.msra.mxu0 0
        %769 = vmatprep.subr.bf16.mxu0 0
        %770 = vmatpush1.bf16.msra.mxu0 0
        %771 = vmatprep.subr.bf16.mxu0 0
        %772 = vmatpush1.bf16.msra.mxu0 0
        %773 = vmatprep.subr.bf16.mxu0 0
        %774 = vmatpush1.bf16.msra.mxu0 0
        %775 = vmatprep.subr.bf16.mxu0 0
        %776 = vmatpush1.bf16.msra.mxu0 0
        %777 = vmatprep.mubr.bf16.mxu0 0
        %778 = vmatmul.mubr.bf16.gmra.mrb[0].mxu0 %v680
        %v779 = vpop.f32.mrb[0].mxu0
        %v780 = vadd.f32 0.0, %v779
        %v781 = vpop.f32.mrb[0].mxu0
        %v782 = vpop.f32.mrb[0].mxu0
        %v783 = vpop.f32.mrb[0].mxu0
        %784 = vdwg.mxu0
        %v785 = vmul.f32 %v563, %v675
        %v786 = vsel %vm524, %v785, 0.0
        %787 = vadd.xlane.f32.xlu0 %v786
        %v788 = vpop.xlane.xlu0 %787
        %790 = vrot.lane.b32.xlu0 %v675, 96
        %v791 = vpop.permute.xlu0 %790
        %v793 = vmul.f32 %v563, %v791
        %v794 = vsel %vm524, %v793, 0.0
        %795 = vadd.xlane.f32.xlu0 %v794
        %v796 = vpop.xlane.xlu0 %795
        %797 = vrot.lane.b32.xlu0 %v675, 64
        %v798 = vpop.permute.xlu0 %797
        %v800 = vmul.f32 %v563, %v798
        %v801 = vsel %vm524, %v800, 0.0
        %802 = vadd.xlane.f32.xlu0 %v801
        %v803 = vpop.xlane.xlu0 %802
        %804 = vrot.lane.b32.xlu0 %v675, 32
        %v805 = vpop.permute.xlu0 %804
        %v807 = vmul.f32 %v563, %v805
        %v808 = vsel %vm524, %v807, 0.0
        %809 = vadd.xlane.f32.xlu0 %v808
        %v810 = vpop.xlane.xlu0 %809
        %v811 = vmax.f32 %v788, %v796
        %v812 = vmax.f32 %v811, %v803
        %v813 = vmax.f32 %v812, %v810
        %v814 = vsub.f32 %v788, %v813
        %v815 = vmul.f32 %v814, 1.442695
        %v816 = vpow.pop %v815
        %v817 = vsub.f32 %v796, %v813
        %v818 = vmul.f32 %v817, 1.442695
        %v819 = vpow.pop %v818
        %v820 = vsub.f32 %v803, %v813
        %v821 = vmul.f32 %v820, 1.442695
        %v822 = vpow.pop %v821
        %v823 = vsub.f32 %v810, %v813
        %v824 = vmul.f32 %v823, 1.442695
        %v825 = vpow.pop %v824
        %v826 = vadd.f32 %v816, %v819
        %v827 = vadd.f32 %v826, %v822
        %v828 = vadd.f32 %v827, %v825
        %v829 = vrcp.pop %v828
        %v830 = vmul.f32 %v816, %v780
        %v831 = vmul.f32 %v819, %v780
        %833 = vrot.lane.b32.xlu0 %v831, 96
        %v834 = vpop.permute.xlu0 %833
        %v836 = vadd.f32 %v830, %v834
        %v837 = vmul.f32 %v822, %v780
        %839 = vrot.lane.b32.xlu0 %v837, 64
        %v840 = vpop.permute.xlu0 %839
        %v842 = vadd.f32 %v836, %v840
        %v843 = vmul.f32 %v825, %v780
        %845 = vrot.lane.b32.xlu0 %v843, 32
        %v846 = vpop.permute.xlu0 %845
        %v848 = vadd.f32 %v842, %v846
        %v849 = vmul.f32 %v848, %v829
        %v850 = vld [vmem:[%s437] sm:$0xff]
        %v851 = vadd.f32 %v849, %v850
        %852 = vst.msk [vmem:[%s498] sm:$0xff] %vm524, %v851
        %s853 = sand.u32 %s250, 1
        %s854 = scalar_lea.sflag [#allocation4], %s853
        %s855 = sand.u32 %s250, 1
        %s856 = smul.addr %s855, 8
        %s857 = scalar_lea.vmem [#allocation14], %s856
        // Predicated region
        $region85: #{tpu_custom_call.1} parent=55 // pred_check
          %p858 = pneg %p260
        $region86: #{tpu_custom_call.1} parent=55 // pred_check_branch
          %860 = sbr.rel (%p858) target = $region88
        $region87: #{tpu_custom_call.1} parent=55 // pred_region
          %s862 = ssub.s32 128, 128
          %863 = vsyncadd %s854, %s862
          %s864 = smul.addr %s33, 128
          %s865 = scalar_lea.hbm %s9, %s864
          %s867 = sshll.u32 %s857, 4
          %s868 = int_to_ptr.vmem [resolvable:$true] %s867
          %870 = dma.vmem_to_hbm [thread:$0]  %s868, 128, %s865, %s854
        $region88: #{tpu_custom_call.1} parent=55 // pred_fallthru
          _
      $region56: #{tpu_custom_call.1} parent=5 // pred_fallthru
        _
      %p871 = scmp.le.s32.totalorder 2, %s28
      // Predicated region
      $region89: #{tpu_custom_call.1} parent=5 // pred_check
        %p872 = pneg %p871
      $region90: #{tpu_custom_call.1} parent=5 // pred_check_branch
        %874 = sbr.rel (%p872) target = $region92
      $region91: #{tpu_custom_call.1} parent=5 // pred_region
        %s875 = ssub.s32 %s28, 2
        // Predicated region
        $region93: #{tpu_custom_call.1} parent=91 // pred_check
          %p876 = pneg %p266
        $region94: #{tpu_custom_call.1} parent=91 // pred_check_branch
          %878 = sbr.rel (%p876) target = $region96
        $region95: #{tpu_custom_call.1} parent=91 // pred_region
          %s879 = sand.u32 %s251, 1
          %s880 = scalar_lea.sflag [#allocation4], %s879
          %s881 = sand.u32 %s251, 1
          %s882 = smul.addr %s881, 8
          %s883 = scalar_lea.vmem [#allocation14], %s882
          %884 = dma.done %s880, 128
        $region96: #{tpu_custom_call.1} parent=91 // pred_fallthru
          _
      $region92: #{tpu_custom_call.1} parent=5 // pred_fallthru
        _
    $region6: #{tpu_custom_call.1} parent=1 // loop_footer
      %s32 = sadd.s32 1, %s28
    $region7: #{tpu_custom_call.1} parent=1 // loop_footer_branch
      %27 = sbr.rel target = $region3
    $region8: #{tpu_custom_call.1} parent=1 // loop_exit
      _
    %885 = vsyncpa [#allocation3], 1
    %s886 = scalar_lea.sflag [#allocation3], 1
    %887 = vsyncpa %s886, 1
    %888 = vsyncpa [#allocation6], 1
    %s889 = scalar_lea.sflag [#allocation6], 1
    %890 = vsyncpa %s889, 1
    %891 = vsyncpa [#allocation9], 1
    %s892 = scalar_lea.sflag [#allocation9], 1
    %893 = vsyncpa %s892, 1
    %894 = vsyncpa [#allocation12], 1
    %895 = vsyncpa [#allocation4], 1
    %s896 = scalar_lea.sflag [#allocation4], 1
    %897 = vsyncpa %s896, 1

// kernel: tpu_custom_call.1
$region0: #{tpu_custom_call.1}
  #allocation0 [shape = 'u32[]', space=smem, size = 0x4, offset = 0x4, fixed_abs, tag = 'smem constant byte address 0x4 - core index']
  #allocation1 [shape = 'u32[144,128]{1,0:T(1,128)}', space=vmem, size = 0x12000, scoped, tag = 'internal scratch']
  %s0 = inlined_call_operand.hbm [shape: bf16[16,32], index: 0, kind: input, shape index: {}]
  %s1 = inlined_call_operand.hbm [shape: bf16[16,128], index: 1, kind: input, shape index: {}]
  %s2 = inlined_call_operand.hbm [shape: bf16[16,128], index: 2, kind: input, shape index: {}]
  %s3 = inlined_call_operand.hbm [shape: f32[16,32], index: 3, kind: input, shape index: {}]
  %s4 = inlined_call_operand.hbm [shape: bf16[32,32], index: 4, kind: input, shape index: {}]
  %s5 = inlined_call_operand.vmem [shape: f32[1,32], index: 5, kind: input, shape index: {}]
  %s6 = inlined_call_operand.hbm [shape: bf16[128,128], index: 6, kind: input, shape index: {}]
  %s7 = inlined_call_operand.vmem [shape: f32[1,128], index: 7, kind: input, shape index: {}]
  %s8 = inlined_call_operand.hbm [shape: bf16[128,128], index: 8, kind: input, shape index: {}]
  %s9 = inlined_call_operand.hbm [shape: f32[16,32], index: 9, kind: output, shape index: {}]
  %s10 = sld [smem:[#allocation0]]
  $region97: #{tpu_custom_call.1} parent=0
    _
  %s12 = ssub.s32 1, %s10
  %s13 = scalar_select 0, %s12, %s10
  $region1: #{tpu_custom_call.1} parent=0
    #allocation2 [shape = 'u8[4096]{0}', space=vmem, size = 0x1000, scoped, tag = 'input window, operand 0']
    #allocation3 [shape = 's32[2]{0}', space=sflag, size = 0x8, scoped, tag = 'scoped memory for tpu_custom_call.1']
    #allocation4 [shape = 's32[2]{0}', space=sflag, size = 0x8, scoped, tag = 'scoped memory for tpu_custom_call.1']
    #allocation5 [shape = 'u8[4096]{0}', space=vmem, size = 0x1000, scoped, tag = 'input window, operand 1']
    #allocation6 [shape = 's32[2]{0}', space=sflag, size = 0x8, scoped, tag = 'scoped memory for tpu_custom_call.1']
    #allocation7 [shape = 'u8[4096]{0}', space=vmem, size = 0x1000, scoped, tag = 'input window, operand 2']
    #allocation8 [shape = 'u8[8192]{0}', space=vmem, size = 0x2000, scoped, tag = 'input window, operand 3']
    #allocation9 [shape = 's32[2]{0}', space=sflag, size = 0x8, scoped, tag = 'scoped memory for tpu_custom_call.1']
    #allocation10 [shape = 'u8[8192]{0}', space=vmem, size = 0x2000, scoped, tag = 'input window, operand 4, single buffered']
    #allocation11 [shape = 'u8[32768]{0}', space=vmem, size = 0x8000, scoped, tag = 'input window, operand 6, single buffered']
    #allocation12 [shape = 's32[1]{0}', space=sflag, size = 0x4, scoped, tag = 'scoped memory for tpu_custom_call.1']
    #allocation13 [shape = 'u8[32768]{0}', space=vmem, size = 0x8000, scoped, tag = 'input window, operand 8, single buffered']
    #allocation14 [shape = 'u8[8192]{0}', space=vmem, size = 0x2000, scoped, tag = 'output window, operand 0']
    %14 = vsyncpa [#allocation3], 0
    %s15 = scalar_lea.sflag [#allocation3], 1
    %16 = vsyncpa %s15, 0
    %17 = vsyncpa [#allocation6], 0
    %s18 = scalar_lea.sflag [#allocation6], 1
    %19 = vsyncpa %s18, 0
    %20 = vsyncpa [#allocation9], 0
    %s21 = scalar_lea.sflag [#allocation9], 1
    %22 = vsyncpa %s21, 0
    %23 = vsyncpa [#allocation12], 0
    %24 = vsyncpa [#allocation4], 0
    %s25 = scalar_lea.sflag [#allocation4], 1
    %26 = vsyncpa %s25, 0
    loop: start=0, step=1, limit=4
    $region2: #{tpu_custom_call.1} parent=1 // loop_pre_header
      _
    $region3: #{tpu_custom_call.1} parent=1 // loop_header
      %s28 = sphi 0, %s32
      %p29 = scmp.ge.s32.totalorder %s28, 4
      %s38 = sphi 0, %s40
      %s41 = sphi 0, %s38
      %s42 = sphi 0, %s41
      %s58 = sphi 0, %s42
      %s64 = sphi 0, %s66
      %s67 = sphi 0, %s64
      %s68 = sphi 0, %s67
      %s84 = sphi 0, %s68
      %s90 = sphi 0, %s92
      %s93 = sphi 0, %s90
      %s94 = sphi 0, %s93
      %s110 = sphi 0, %s94
      %s116 = sphi 0, %s118
      %s119 = sphi 0, %s116
      %s120 = sphi 0, %s119
      %s136 = sphi 0, %s120
      %s140 = sphi 0, %s140
      %s142 = sphi 0, %s140
      %s143 = sphi 0, %s142
      %s157 = sphi 0, %s143
      %s161 = sphi 0, %s161
      %s163 = sphi 0, %s161
      %s164 = sphi 0, %s163
      %s178 = sphi 0, %s164
      %s182 = sphi 0, %s182
      %s184 = sphi 0, %s182
      %s185 = sphi 0, %s184
      %s199 = sphi 0, %s185
      %s203 = sphi 0, %s203
      %s205 = sphi 0, %s203
      %s206 = sphi 0, %s205
      %s220 = sphi 0, %s206
      %s224 = sphi 0, %s224
      %s226 = sphi 0, %s224
      %s227 = sphi 0, %s226
      %s241 = sphi 0, %s227
      %s247 = sphi 0, %s249
      %s250 = sphi 0, %s247
      %s251 = sphi 0, %s250
      %s267 = sphi 0, %s251
    $region4: #{tpu_custom_call.1} parent=1 // loop_header_branch
      %31 = sbr.rel (%p29) target = $region8
    $region5: #{tpu_custom_call.1} parent=1 // loop_body
      %s33 = ssub.s32 %s28, 1
      %s34 = ssub.s32 %s28, 2
      %s35 = sadd.s32 %s28, 1
      %s36 = ssub.s32 %s28, %s35
      %p37 = scmp.eq.s32.totalorder %s36, 0
      %s39 = sadd.s32 %s38, 1
      %s40 = scalar_select %p37, %s38, %s39
      %p43 = pneg %p37
      %p44 = scmp.eq.s32.totalorder %s28, 1
      %p45 = por %p43, %p44
      %p46 = scmp.ne.s32.totalorder %s38, %s41
      %p47 = scmp.eq.s32.totalorder %s28, 0
      %p48 = por %p46, %p47
      %p49 = scmp.ne.s32.totalorder %s38, %s41
      %p50 = scmp.eq.s32.totalorder %s33, 1
      %p51 = por %p49, %p50
      %p52 = scmp.ne.s32.totalorder %s41, %s42
      %p53 = scmp.eq.s32.totalorder %s33, 0
      %p54 = por %p52, %p53
      %p55 = scmp.ne.s32.totalorder %s41, %s42
      %p56 = scmp.eq.s32.totalorder %s34, 1
      %p57 = por %p55, %p56
      %p59 = scmp.ne.s32.totalorder %s42, %s58
      %p60 = scmp.eq.s32.totalorder %s34, 0
      %p61 = por %p59, %p60
      %s62 = ssub.s32 %s28, %s35
      %p63 = scmp.eq.s32.totalorder %s62, 0
      %s65 = sadd.s32 %s64, 1
      %s66 = scalar_select %p63, %s64, %s65
      %p69 = pneg %p63
      %p70 = scmp.eq.s32.totalorder %s28, 1
      %p71 = por %p69, %p70
      %p72 = scmp.ne.s32.totalorder %s64, %s67
      %p73 = scmp.eq.s32.totalorder %s28, 0
      %p74 = por %p72, %p73
      %p75 = scmp.ne.s32.totalorder %s64, %s67
      %p76 = scmp.eq.s32.totalorder %s33, 1
      %p77 = por %p75, %p76
      %p78 = scmp.ne.s32.totalorder %s67, %s68
      %p79 = scmp.eq.s32.totalorder %s33, 0
      %p80 = por %p78, %p79
      %p81 = scmp.ne.s32.totalorder %s67, %s68
      %p82 = scmp.eq.s32.totalorder %s34, 1
      %p83 = por %p81, %p82
      %p85 = scmp.ne.s32.totalorder %s68, %s84
      %p86 = scmp.eq.s32.totalorder %s34, 0
      %p87 = por %p85, %p86
      %s88 = ssub.s32 %s28, %s35
      %p89 = scmp.eq.s32.totalorder %s88, 0
      %s91 = sadd.s32 %s90, 1
      %s92 = scalar_select %p89, %s90, %s91
      %p95 = pneg %p89
      %p96 = scmp.eq.s32.totalorder %s28, 1
      %p97 = por %p95, %p96
      %p98 = scmp.ne.s32.totalorder %s90, %s93
      %p99 = scmp.eq.s32.totalorder %s28, 0
      %p100 = por %p98, %p99
      %p101 = scmp.ne.s32.totalorder %s90, %s93
      %p102 = scmp.eq.s32.totalorder %s33, 1
      %p103 = por %p101, %p102
      %p104 = scmp.ne.s32.totalorder %s93, %s94
      %p105 = scmp.eq.s32.totalorder %s33, 0
      %p106 = por %p104, %p105
      %p107 = scmp.ne.s32.totalorder %s93, %s94
      %p108 = scmp.eq.s32.totalorder %s34, 1
      %p109 = por %p107, %p108
      %p111 = scmp.ne.s32.totalorder %s94, %s110
      %p112 = scmp.eq.s32.totalorder %s34, 0
      %p113 = por %p111, %p112
      %s114 = ssub.s32 %s28, %s35
      %p115 = scmp.eq.s32.totalorder %s114, 0
      %s117 = sadd.s32 %s116, 1
      %s118 = scalar_select %p115, %s116, %s117
      %p121 = pneg %p115
      %p122 = scmp.eq.s32.totalorder %s28, 1
      %p123 = por %p121, %p122
      %p124 = scmp.ne.s32.totalorder %s116, %s119
      %p125 = scmp.eq.s32.totalorder %s28, 0
      %p126 = por %p124, %p125
      %p127 = scmp.ne.s32.totalorder %s116, %s119
      %p128 = scmp.eq.s32.totalorder %s33, 1
      %p129 = por %p127, %p128
      %p130 = scmp.ne.s32.totalorder %s119, %s120
      %p131 = scmp.eq.s32.totalorder %s33, 0
      %p132 = por %p130, %p131
      %p133 = scmp.ne.s32.totalorder %s119, %s120
      %p134 = scmp.eq.s32.totalorder %s34, 1
      %p135 = por %p133, %p134
      %p137 = scmp.ne.s32.totalorder %s120, %s136
      %p138 = scmp.eq.s32.totalorder %s34, 0
      %p139 = por %p137, %p138
      %s141 = sadd.s32 %s140, 1
      %p144 = scmp.eq.s32.totalorder %s28, 1
      %p145 = scmp.ne.s32.totalorder %s140, %s142
      %p146 = scmp.eq.s32.totalorder %s28, 0
      %p147 = por %p145, %p146
      %p148 = scmp.ne.s32.totalorder %s140, %s142
      %p149 = scmp.eq.s32.totalorder %s33, 1
      %p150 = por %p148, %p149
      %p151 = scmp.ne.s32.totalorder %s142, %s143
      %p152 = scmp.eq.s32.totalorder %s33, 0
      %p153 = por %p151, %p152
      %p154 = scmp.ne.s32.totalorder %s142, %s143
      %p155 = scmp.eq.s32.totalorder %s34, 1
      %p156 = por %p154, %p155
      %p158 = scmp.ne.s32.totalorder %s143, %s157
      %p159 = scmp.eq.s32.totalorder %s34, 0
      %p160 = por %p158, %p159
      %s162 = sadd.s32 %s161, 1
      %p165 = scmp.eq.s32.totalorder %s28, 1
      %p166 = scmp.ne.s32.totalorder %s161, %s163
      %p167 = scmp.eq.s32.totalorder %s28, 0
      %p168 = por %p166, %p167
      %p169 = scmp.ne.s32.totalorder %s161, %s163
      %p170 = scmp.eq.s32.totalorder %s33, 1
      %p171 = por %p169, %p170
      %p172 = scmp.ne.s32.totalorder %s163, %s164
      %p173 = scmp.eq.s32.totalorder %s33, 0
      %p174 = por %p172, %p173
      %p175 = scmp.ne.s32.totalorder %s163, %s164
      %p176 = scmp.eq.s32.totalorder %s34, 1
      %p177 = por %p175, %p176
      %p179 = scmp.ne.s32.totalorder %s164, %s178
      %p180 = scmp.eq.s32.totalorder %s34, 0
      %p181 = por %p179, %p180
      %s183 = sadd.s32 %s182, 1
      %p186 = scmp.eq.s32.totalorder %s28, 1
      %p187 = scmp.ne.s32.totalorder %s182, %s184
      %p188 = scmp.eq.s32.totalorder %s28, 0
      %p189 = por %p187, %p188
      %p190 = scmp.ne.s32.totalorder %s182, %s184
      %p191 = scmp.eq.s32.totalorder %s33, 1
      %p192 = por %p190, %p191
      %p193 = scmp.ne.s32.totalorder %s184, %s185
      %p194 = scmp.eq.s32.totalorder %s33, 0
      %p195 = por %p193, %p194
      %p196 = scmp.ne.s32.totalorder %s184, %s185
      %p197 = scmp.eq.s32.totalorder %s34, 1
      %p198 = por %p196, %p197
      %p200 = scmp.ne.s32.totalorder %s185, %s199
      %p201 = scmp.eq.s32.totalorder %s34, 0
      %p202 = por %p200, %p201
      %s204 = sadd.s32 %s203, 1
      %p207 = scmp.eq.s32.totalorder %s28, 1
      %p208 = scmp.ne.s32.totalorder %s203, %s205
      %p209 = scmp.eq.s32.totalorder %s28, 0
      %p210 = por %p208, %p209
      %p211 = scmp.ne.s32.totalorder %s203, %s205
      %p212 = scmp.eq.s32.totalorder %s33, 1
      %p213 = por %p211, %p212
      %p214 = scmp.ne.s32.totalorder %s205, %s206
      %p215 = scmp.eq.s32.totalorder %s33, 0
      %p216 = por %p214, %p215
      %p217 = scmp.ne.s32.totalorder %s205, %s206
      %p218 = scmp.eq.s32.totalorder %s34, 1
      %p219 = por %p217, %p218
      %p221 = scmp.ne.s32.totalorder %s206, %s220
      %p222 = scmp.eq.s32.totalorder %s34, 0
      %p223 = por %p221, %p222
      %s225 = sadd.s32 %s224, 1
      %p228 = scmp.eq.s32.totalorder %s28, 1
      %p229 = scmp.ne.s32.totalorder %s224, %s226
      %p230 = scmp.eq.s32.totalorder %s28, 0
      %p231 = por %p229, %p230
      %p232 = scmp.ne.s32.totalorder %s224, %s226
      %p233 = scmp.eq.s32.totalorder %s33, 1
      %p234 = por %p232, %p233
      %p235 = scmp.ne.s32.totalorder %s226, %s227
      %p236 = scmp.eq.s32.totalorder %s33, 0
      %p237 = por %p235, %p236
      %p238 = scmp.ne.s32.totalorder %s226, %s227
      %p239 = scmp.eq.s32.totalorder %s34, 1
      %p240 = por %p238, %p239
      %p242 = scmp.ne.s32.totalorder %s227, %s241
      %p243 = scmp.eq.s32.totalorder %s34, 0
      %p244 = por %p242, %p243
      %s245 = ssub.s32 %s28, %s35
      %p246 = scmp.eq.s32.totalorder %s245, 0
      %s248 = sadd.s32 %s247, 1
      %s249 = scalar_select %p246, %s247, %s248
      %p252 = pneg %p246
      %p253 = scmp.eq.s32.totalorder %s28, 1
      %p254 = por %p252, %p253
      %p255 = scmp.ne.s32.totalorder %s247, %s250
      %p256 = scmp.eq.s32.totalorder %s28, 0
      %p257 = por %p255, %p256
      %p258 = scmp.ne.s32.totalorder %s247, %s250
      %p259 = scmp.eq.s32.totalorder %s33, 1
      %p260 = por %p258, %p259
      %p261 = scmp.ne.s32.totalorder %s250, %s251
      %p262 = scmp.eq.s32.totalorder %s33, 0
      %p263 = por %p261, %p262
      %p264 = scmp.ne.s32.totalorder %s250, %s251
      %p265 = scmp.eq.s32.totalorder %s34, 1
      %p266 = por %p264, %p265
      %p268 = scmp.ne.s32.totalorder %s251, %s267
      %p269 = scmp.eq.s32.totalorder %s34, 0
      %p270 = por %p268, %p269
      %p271 = scmp.le.s32.totalorder 1, %s28
      %p272 = scmp.lt.s32.totalorder %s28, 3
      %p273 = pnand %p271, %p272
      %p274 = pneg %p273
      // Predicated region
      $region9: #{tpu_custom_call.1} parent=5 // pred_check
        _
      $region10: #{tpu_custom_call.1} parent=5 // pred_check_branch
        %276 = sbr.rel (%p273) target = $region12
      $region11: #{tpu_custom_call.1} parent=5 // pred_region
        %s277 = ssub.s32 %s28, 1
        // Predicated region
        $region13: #{tpu_custom_call.1} parent=11 // pred_check
          %p278 = pneg %p153
        $region14: #{tpu_custom_call.1} parent=11 // pred_check_branch
          %280 = sbr.rel (%p278) target = $region16
        $region15: #{tpu_custom_call.1} parent=11 // pred_region
          %s282 = ssub.s32 256, 256
          %283 = vsyncadd [#allocation9], %s282
          %s284 = sshll.u32 [#allocation10], 4
          %s285 = int_to_ptr.vmem [resolvable:$true] %s284
          %290 = dma.hbm_to_vmem [thread:$0]  %s4, 256, %s285, [#allocation9], 64, 64, 4
        $region16: #{tpu_custom_call.1} parent=11 // pred_fallthru
          _
        // Predicated region
        $region17: #{tpu_custom_call.1} parent=11 // pred_check
          %p291 = pneg %p174
        $region18: #{tpu_custom_call.1} parent=11 // pred_check_branch
          %293 = sbr.rel (%p291) target = $region20
        $region19: #{tpu_custom_call.1} parent=11 // pred_region
          _
        $region20: #{tpu_custom_call.1} parent=11 // pred_fallthru
          _
        // Predicated region
        $region21: #{tpu_custom_call.1} parent=11 // pred_check
          %p294 = pneg %p195
        $region22: #{tpu_custom_call.1} parent=11 // pred_check_branch
          %296 = sbr.rel (%p294) target = $region24
        $region23: #{tpu_custom_call.1} parent=11 // pred_region
          %s298 = ssub.s32 1024, 1024
          %299 = vsyncadd [#allocation12], %s298
          %s300 = sshll.u32 [#allocation11], 4
          %s301 = int_to_ptr.vmem [resolvable:$true] %s300
          %306 = dma.hbm_to_vmem [thread:$0]  %s6, 1024, %s301, [#allocation12], 64, 64, 4
        $region24: #{tpu_custom_call.1} parent=11 // pred_fallthru
          _
        // Predicated region
        $region25: #{tpu_custom_call.1} parent=11 // pred_check
          %p307 = pneg %p216
        $region26: #{tpu_custom_call.1} parent=11 // pred_check_branch
          %309 = sbr.rel (%p307) target = $region28
        $region27: #{tpu_custom_call.1} parent=11 // pred_region
          _
        $region28: #{tpu_custom_call.1} parent=11 // pred_fallthru
          _
        // Predicated region
        $region29: #{tpu_custom_call.1} parent=11 // pred_check
          %p310 = pneg %p237
        $region30: #{tpu_custom_call.1} parent=11 // pred_check_branch
          %312 = sbr.rel (%p310) target = $region32
        $region31: #{tpu_custom_call.1} parent=11 // pred_region
          %s314 = ssub.s32 1024, 1024
          %315 = vsyncadd [#allocation12], %s314
          %s316 = sshll.u32 [#allocation13], 4
          %s317 = int_to_ptr.vmem [resolvable:$true] %s316
          %322 = dma.hbm_to_vmem [thread:$0]  %s8, 1024, %s317, [#allocation12], 64, 64, 4
        $region32: #{tpu_custom_call.1} parent=11 // pred_fallthru
          _
      $region12: #{tpu_custom_call.1} parent=5 // pred_fallthru
        _
      %p323 = scmp.lt.s32.totalorder %s28, 2
      // Predicated region
      $region33: #{tpu_custom_call.1} parent=5 // pred_check
        %p324 = pneg %p323
      $region34: #{tpu_custom_call.1} parent=5 // pred_check_branch
        %326 = sbr.rel (%p324) target = $region36
      $region35: #{tpu_custom_call.1} parent=5 // pred_region
        // Predicated region
        $region37: #{tpu_custom_call.1} parent=35 // pred_check
          %p327 = pneg %p48
        $region38: #{tpu_custom_call.1} parent=35 // pred_check_branch
          %329 = sbr.rel (%p327) target = $region40
        $region39: #{tpu_custom_call.1} parent=35 // pred_region
          %s330 = sand.u32 %s38, 1
          %s331 = scalar_lea.sflag [#allocation3], %s330
          %s332 = sand.u32 %s38, 1
          %s333 = smul.addr %s332, 4
          %s334 = scalar_lea.vmem [#allocation2], %s333
          %s336 = ssub.s32 64, 64
          %337 = vsyncadd %s331, %s336
          %s338 = smul.addr %s28, 64
          %s339 = scalar_lea.hbm %s0, %s338
          %s341 = sshll.u32 %s334, 4
          %s342 = int_to_ptr.vmem [resolvable:$true] %s341
          %344 = dma.hbm_to_vmem [thread:$0]  %s339, 64, %s342, %s331
        $region40: #{tpu_custom_call.1} parent=35 // pred_fallthru
          _
        // Predicated region
        $region41: #{tpu_custom_call.1} parent=35 // pred_check
          %p345 = pneg %p74
        $region42: #{tpu_custom_call.1} parent=35 // pred_check_branch
          %347 = sbr.rel (%p345) target = $region44
        $region43: #{tpu_custom_call.1} parent=35 // pred_region
          %s348 = sand.u32 %s28, 1
          %s349 = scalar_lea.sflag [#allocation6], %s348
          %s350 = sand.u32 %s64, 1
          %s351 = smul.addr %s350, 4
          %s352 = scalar_lea.vmem [#allocation5], %s351
          %s354 = ssub.s32 64, 64
          %355 = vsyncadd %s349, %s354
          %s356 = smul.addr %s28, 64
          %s357 = scalar_lea.hbm %s1, %s356
          %s359 = sshll.u32 %s352, 4
          %s360 = int_to_ptr.vmem [resolvable:$true] %s359
          %362 = dma.hbm_to_vmem [thread:$0]  %s357, 64, %s360, %s349
        $region44: #{tpu_custom_call.1} parent=35 // pred_fallthru
          _
        // Predicated region
        $region45: #{tpu_custom_call.1} parent=35 // pred_check
          %p363 = pneg %p100
        $region46: #{tpu_custom_call.1} parent=35 // pred_check_branch
          %365 = sbr.rel (%p363) target = $region48
        $region47: #{tpu_custom_call.1} parent=35 // pred_region
          %s366 = sand.u32 %s28, 1
          %s367 = scalar_lea.sflag [#allocation6], %s366
          %s368 = sand.u32 %s90, 1
          %s369 = smul.addr %s368, 4
          %s370 = scalar_lea.vmem [#allocation7], %s369
          %s372 = ssub.s32 64, 64
          %373 = vsyncadd %s367, %s372
          %s374 = smul.addr %s28, 64
          %s375 = scalar_lea.hbm %s2, %s374
          %s377 = sshll.u32 %s370, 4
          %s378 = int_to_ptr.vmem [resolvable:$true] %s377
          %380 = dma.hbm_to_vmem [thread:$0]  %s375, 64, %s378, %s367
        $region48: #{tpu_custom_call.1} parent=35 // pred_fallthru
          _
        // Predicated region
        $region49: #{tpu_custom_call.1} parent=35 // pred_check
          %p381 = pneg %p126
        $region50: #{tpu_custom_call.1} parent=35 // pred_check_branch
          %383 = sbr.rel (%p381) target = $region52
        $region51: #{tpu_custom_call.1} parent=35 // pred_region
          %s384 = sand.u32 %s28, 1
          %s385 = scalar_lea.sflag [#allocation9], %s384
          %s386 = sand.u32 %s116, 1
          %s387 = smul.addr %s386, 8
          %s388 = scalar_lea.vmem [#allocation8], %s387
          %s390 = ssub.s32 128, 128
          %391 = vsyncadd %s385, %s390
          %s392 = smul.addr %s28, 128
          %s393 = scalar_lea.hbm %s3, %s392
          %s395 = sshll.u32 %s388, 4
          %s396 = int_to_ptr.vmem [resolvable:$true] %s395
          %398 = dma.hbm_to_vmem [thread:$0]  %s393, 128, %s396, %s385
        $region52: #{tpu_custom_call.1} parent=35 // pred_fallthru
          _
      $region36: #{tpu_custom_call.1} parent=5 // pred_fallthru
        _
      %p399 = scmp.le.s32.totalorder 1, %s28
      %p400 = scmp.lt.s32.totalorder %s28, 3
      %p401 = pnand %p399, %p400
      %p402 = pneg %p401
      // Predicated region
      $region53: #{tpu_custom_call.1} parent=5 // pred_check
        _
      $region54: #{tpu_custom_call.1} parent=5 // pred_check_branch
        %404 = sbr.rel (%p401) target = $region56
      $region55: #{tpu_custom_call.1} parent=5 // pred_region
        %s405 = ssub.s32 %s28, 1
        %s406 = sand.u32 %s41, 1
        %s407 = scalar_lea.sflag [#allocation3], %s406
        %s408 = sand.u32 %s41, 1
        %s409 = smul.addr %s408, 4
        %s410 = scalar_lea.vmem [#allocation2], %s409
        // Predicated region
        $region57: #{tpu_custom_call.1} parent=55 // pred_check
          %p411 = pneg %p54
        $region58: #{tpu_custom_call.1} parent=55 // pred_check_branch
          %413 = sbr.rel (%p411) target = $region60
        $region59: #{tpu_custom_call.1} parent=55 // pred_region
          %414 = dma.done %s407, 64
        $region60: #{tpu_custom_call.1} parent=55 // pred_fallthru
          _
        %s415 = sand.u32 %s33, 1
        %s416 = scalar_lea.sflag [#allocation6], %s415
        %s417 = sand.u32 %s67, 1
        %s418 = smul.addr %s417, 4
        %s419 = scalar_lea.vmem [#allocation5], %s418
        // Predicated region
        $region61: #{tpu_custom_call.1} parent=55 // pred_check
          %p420 = pneg %p80
        $region62: #{tpu_custom_call.1} parent=55 // pred_check_branch
          %422 = sbr.rel (%p420) target = $region64
        $region63: #{tpu_custom_call.1} parent=55 // pred_region
          %423 = dma.done %s416, 64
        $region64: #{tpu_custom_call.1} parent=55 // pred_fallthru
          _
        %s424 = sand.u32 %s33, 1
        %s425 = scalar_lea.sflag [#allocation6], %s424
        %s426 = sand.u32 %s93, 1
        %s427 = smul.addr %s426, 4
        %s428 = scalar_lea.vmem [#allocation7], %s427
        // Predicated region
        $region65: #{tpu_custom_call.1} parent=55 // pred_check
          %p429 = pneg %p106
        $region66: #{tpu_custom_call.1} parent=55 // pred_check_branch
          %431 = sbr.rel (%p429) target = $region68
        $region67: #{tpu_custom_call.1} parent=55 // pred_region
          %432 = dma.done %s425, 64
        $region68: #{tpu_custom_call.1} parent=55 // pred_fallthru
          _
        %s433 = sand.u32 %s33, 1
        %s434 = scalar_lea.sflag [#allocation9], %s433
        %s435 = sand.u32 %s119, 1
        %s436 = smul.addr %s435, 8
        %s437 = scalar_lea.vmem [#allocation8], %s436
        // Predicated region
        $region69: #{tpu_custom_call.1} parent=55 // pred_check
          %p438 = pneg %p132
        $region70: #{tpu_custom_call.1} parent=55 // pred_check_branch
          %440 = sbr.rel (%p438) target = $region72
        $region71: #{tpu_custom_call.1} parent=55 // pred_region
          %441 = dma.done %s434, 128
        $region72: #{tpu_custom_call.1} parent=55 // pred_fallthru
          _
        // Predicated region
        $region73: #{tpu_custom_call.1} parent=55 // pred_check
          %p442 = pneg %p153
        $region74: #{tpu_custom_call.1} parent=55 // pred_check_branch
          %444 = sbr.rel (%p442) target = $region76
        $region75: #{tpu_custom_call.1} parent=55 // pred_region
          %445 = dma.done [#allocation9], 256
        $region76: #{tpu_custom_call.1} parent=55 // pred_fallthru
          _
        // Predicated region
        $region77: #{tpu_custom_call.1} parent=55 // pred_check
          %p446 = pneg %p195
        $region78: #{tpu_custom_call.1} parent=55 // pred_check_branch
          %448 = sbr.rel (%p446) target = $region80
        $region79: #{tpu_custom_call.1} parent=55 // pred_region
          %449 = dma.done [#allocation12], 1024
        $region80: #{tpu_custom_call.1} parent=55 // pred_fallthru
          _
        // Predicated region
        $region81: #{tpu_custom_call.1} parent=55 // pred_check
          %p450 = pneg %p237
        $region82: #{tpu_custom_call.1} parent=55 // pred_check_branch
          %452 = sbr.rel (%p450) target = $region84
        $region83: #{tpu_custom_call.1} parent=55 // pred_region
          %453 = dma.done [#allocation12], 1024
        $region84: #{tpu_custom_call.1} parent=55 // pred_fallthru
          _
        %s454 = sand.u32 %s41, 1
        %s455 = scalar_lea.sflag [#allocation3], %s454
        %s456 = sand.u32 %s41, 1
        %s457 = smul.addr %s456, 4
        %s458 = scalar_lea.vmem [#allocation2], %s457
        %p459 = pneg %p54
        %p460 = pneg %p51
        %s461 = sand.u32 %s33, 1
        %s462 = scalar_lea.sflag [#allocation6], %s461
        %s463 = sand.u32 %s67, 1
        %s464 = smul.addr %s463, 4
        %s465 = scalar_lea.vmem [#allocation5], %s464
        %p466 = pneg %p80
        %p467 = pneg %p77
        %s468 = sand.u32 %s33, 1
        %s469 = scalar_lea.sflag [#allocation6], %s468
        %s470 = sand.u32 %s93, 1
        %s471 = smul.addr %s470, 4
        %s472 = scalar_lea.vmem [#allocation7], %s471
        %p473 = pneg %p106
        %p474 = pneg %p103
        %s475 = sand.u32 %s33, 1
        %s476 = scalar_lea.sflag [#allocation9], %s475
        %s477 = sand.u32 %s119, 1
        %s478 = smul.addr %s477, 8
        %s479 = scalar_lea.vmem [#allocation8], %s478
        %p480 = pneg %p132
        %p481 = pneg %p129
        %p482 = pneg %p153
        %p483 = pneg %p150
        %p484 = pneg %p174
        %p485 = pneg %p171
        %p486 = pneg %p195
        %p487 = pneg %p192
        %p488 = pneg %p216
        %p489 = pneg %p213
        %p490 = pneg %p237
        %p491 = pneg %p234
        %p492 = pneg %p263
        %p493 = pneg %p260
        %s494 = sand.u32 %s250, 1
        %s495 = scalar_lea.sflag [#allocation4], %s494
        %s496 = sand.u32 %s250, 1
        %s497 = smul.addr %s496, 8
        %s498 = scalar_lea.vmem [#allocation14], %s497
        %v500 = vld [vmem:[%s410] sm:$0xf]
        %v501 = vld [vmem:[#allocation10] sm:$0xf]
        %v502 = vld [vmem:[#allocation10 + $0x4] sm:$0xf]
        %v503 = vld [vmem:[#allocation10 + $0x8] sm:$0xf]
        %v504 = vld [vmem:[#allocation10 + $0xc] sm:$0xf]
        %v505 = vld [vmem:[%s5] sm:$0x1]
        %v507 = vlaneseq
        %v508 = vshrl.u32 %v507, 7
        %v509 = vsub.s32 0, %v508
        %v510 = vrot.slane %v505, %v509
        %v516 = vunpack.c.l.b16 %v501
        %v517 = vunpack.c.l.b16 %v502
        %v518 = vunpack.c.l.b16 %v503
        %v519 = vunpack.c.l.b16 %v504
        %v520 = vpack.c.b16 %v517, %v516
        %v521 = vpack.c.b16 %v519, %v518
        %vm524 = vcmask 261120
        %v526 = vsel %vm524, %v500, 0
        %528 = vmatprep.subr.bf16.mxu0 0
        %529 = vmatpush1.bf16.msra.mxu0 %v520
        %530 = vmatprep.subr.bf16.mxu0 0
        %531 = vmatpush1.bf16.msra.mxu0 %v521
        %532 = vmatprep.subr.bf16.mxu0 0
        %533 = vmatpush1.bf16.msra.mxu0 0
        %534 = vmatprep.subr.bf16.mxu0 0
        %535 = vmatpush1.bf16.msra.mxu0 0
        %536 = vmatprep.subr.bf16.mxu0 0
        %537 = vmatpush1.bf16.msra.mxu0 0
        %538 = vmatprep.subr.bf16.mxu0 0
        %539 = vmatpush1.bf16.msra.mxu0 0
        %540 = vmatprep.subr.bf16.mxu0 0
        %541 = vmatpush1.bf16.msra.mxu0 0
        %542 = vmatprep.subr.bf16.mxu0 0
        %543 = vmatpush1.bf16.msra.mxu0 0
        %544 = vmatprep.subr.bf16.mxu0 0
        %545 = vmatpush1.bf16.msra.mxu0 0
        %546 = vmatprep.subr.bf16.mxu0 0
        %547 = vmatpush1.bf16.msra.mxu0 0
        %548 = vmatprep.subr.bf16.mxu0 0
        %549 = vmatpush1.bf16.msra.mxu0 0
        %550 = vmatprep.subr.bf16.mxu0 0
        %551 = vmatpush1.bf16.msra.mxu0 0
        %552 = vmatprep.subr.bf16.mxu0 0
        %553 = vmatpush1.bf16.msra.mxu0 0
        %554 = vmatprep.subr.bf16.mxu0 0
        %555 = vmatpush1.bf16.msra.mxu0 0
        %556 = vmatprep.subr.bf16.mxu0 0
        %557 = vmatpush1.bf16.msra.mxu0 0
        %558 = vmatprep.subr.bf16.mxu0 0
        %559 = vmatpush1.bf16.msra.mxu0 0
        %560 = vmatprep.mubr.bf16.mxu0 0
        %561 = vmatmul.mubr.bf16.gmra.mrb[0].mxu0 %v526
        %v562 = vpop.f32.mrb[0].mxu0
        %v563 = vadd.f32 %v510, %v562
        %v564 = vpop.f32.mrb[0].mxu0
        %v565 = vpop.f32.mrb[0].mxu0
        %v566 = vpop.f32.mrb[0].mxu0
        %567 = vdwg.mxu0
        %v568 = vld [vmem:[%s419] sm:$0xf]
        %v569 = vld [vmem:[#allocation11] sm:$0xf]
        %v570 = vld [vmem:[#allocation11 + $0x4] sm:$0xf]
        %v571 = vld [vmem:[#allocation11 + $0x8] sm:$0xf]
        %v572 = vld [vmem:[#allocation11 + $0xc] sm:$0xf]
        %v573 = vld [vmem:[#allocation11 + $0x10] sm:$0xf]
        %v574 = vld [vmem:[#allocation11 + $0x14] sm:$0xf]
        %v575 = vld [vmem:[#allocation11 + $0x18] sm:$0xf]
        %v576 = vld [vmem:[#allocation11 + $0x1c] sm:$0xf]
        %v577 = vld [vmem:[#allocation11 + $0x20] sm:$0xf]
        %v578 = vld [vmem:[#allocation11 + $0x24] sm:$0xf]
        %v579 = vld [vmem:[#allocation11 + $0x28] sm:$0xf]
        %v580 = vld [vmem:[#allocation11 + $0x2c] sm:$0xf]
        %v581 = vld [vmem:[#allocation11 + $0x30] sm:$0xf]
        %v582 = vld [vmem:[#allocation11 + $0x34] sm:$0xf]
        %v583 = vld [vmem:[#allocation11 + $0x38] sm:$0xf]
        %v584 = vld [vmem:[#allocation11 + $0x3c] sm:$0xf]
        %v585 = vld [vmem:[%s7] sm:$0x1]
        %v587 = vlaneseq
        %v588 = vshrl.u32 %v587, 7
        %v589 = vsub.s32 0, %v588
        %v590 = vrot.slane %v585, %v589
        %v608 = vunpack.c.l.b16 %v569
        %v609 = vunpack.c.l.b16 %v570
        %v610 = vunpack.c.l.b16 %v571
        %v611 = vunpack.c.l.b16 %v572
        %v612 = vunpack.c.l.b16 %v573
        %v613 = vunpack.c.l.b16 %v574
        %v614 = vunpack.c.l.b16 %v575
        %v615 = vunpack.c.l.b16 %v576
        %v616 = vunpack.c.l.b16 %v577
        %v617 = vunpack.c.l.b16 %v578
        %v618 = vunpack.c.l.b16 %v579
        %v619 = vunpack.c.l.b16 %v580
        %v620 = vunpack.c.l.b16 %v581
        %v621 = vunpack.c.l.b16 %v582
        %v622 = vunpack.c.l.b16 %v583
        %v623 = vunpack.c.l.b16 %v584
        %v624 = vpack.c.b16 %v609, %v608
        %v625 = vpack.c.b16 %v611, %v610
        %v626 = vpack.c.b16 %v613, %v612
        %v627 = vpack.c.b16 %v615, %v614
        %v628 = vpack.c.b16 %v617, %v616
        %v629 = vpack.c.b16 %v619, %v618
        %v630 = vpack.c.b16 %v621, %v620
        %v631 = vpack.c.b16 %v623, %v622
        %640 = vmatprep.subr.bf16.mxu0 0
        %641 = vmatpush1.bf16.msra.mxu0 %v624
        %642 = vmatprep.subr.bf16.mxu0 0
        %643 = vmatpush1.bf16.msra.mxu0 %v625
        %644 = vmatprep.subr.bf16.mxu0 0
        %645 = vmatpush1.bf16.msra.mxu0 %v626
        %646 = vmatprep.subr.bf16.mxu0 0
        %647 = vmatpush1.bf16.msra.mxu0 %v627
        %648 = vmatprep.subr.bf16.mxu0 0
        %649 = vmatpush1.bf16.msra.mxu0 %v628
        %650 = vmatprep.subr.bf16.mxu0 0
        %651 = vmatpush1.bf16.msra.mxu0 %v629
        %652 = vmatprep.subr.bf16.mxu0 0
        %653 = vmatpush1.bf16.msra.mxu0 %v630
        %654 = vmatprep.subr.bf16.mxu0 0
        %655 = vmatpush1.bf16.msra.mxu0 %v631
        %656 = vmatprep.subr.bf16.mxu0 0
        %657 = vmatpush1.bf16.msra.mxu0 0
        %658 = vmatprep.subr.bf16.mxu0 0
        %659 = vmatpush1.bf16.msra.mxu0 0
        %660 = vmatprep.subr.bf16.mxu0 0
        %661 = vmatpush1.bf16.msra.mxu0 0
        %662 = vmatprep.subr.bf16.mxu0 0
        %663 = vmatpush1.bf16.msra.mxu0 0
        %664 = vmatprep.subr.bf16.mxu0 0
        %665 = vmatpush1.bf16.msra.mxu0 0
        %666 = vmatprep.subr.bf16.mxu0 0
        %667 = vmatpush1.bf16.msra.mxu0 0
        %668 = vmatprep.subr.bf16.mxu0 0
        %669 = vmatpush1.bf16.msra.mxu0 0
        %670 = vmatprep.subr.bf16.mxu0 0
        %671 = vmatpush1.bf16.msra.mxu0 0
        %672 = vmatprep.mubr.bf16.mxu0 0
        %673 = vmatmul.mubr.bf16.gmra.mrb[0].mxu0 %v568
        %v674 = vpop.f32.mrb[0].mxu0
        %v675 = vadd.f32 %v590, %v674
        %v676 = vpop.f32.mrb[0].mxu0
        %v677 = vpop.f32.mrb[0].mxu0
        %v678 = vpop.f32.mrb[0].mxu0
        %679 = vdwg.mxu0
        %v680 = vld [vmem:[%s428] sm:$0xf]
        %v681 = vld [vmem:[#allocation13] sm:$0xf]
        %v682 = vld [vmem:[#allocation13 + $0x4] sm:$0xf]
        %v683 = vld [vmem:[#allocation13 + $0x8] sm:$0xf]
        %v684 = vld [vmem:[#allocation13 + $0xc] sm:$0xf]
        %v685 = vld [vmem:[#allocation13 + $0x10] sm:$0xf]
        %v686 = vld [vmem:[#allocation13 + $0x14] sm:$0xf]
        %v687 = vld [vmem:[#allocation13 + $0x18] sm:$0xf]
        %v688 = vld [vmem:[#allocation13 + $0x1c] sm:$0xf]
        %v689 = vld [vmem:[#allocation13 + $0x20] sm:$0xf]
        %v690 = vld [vmem:[#allocation13 + $0x24] sm:$0xf]
        %v691 = vld [vmem:[#allocation13 + $0x28] sm:$0xf]
        %v692 = vld [vmem:[#allocation13 + $0x2c] sm:$0xf]
        %v693 = vld [vmem:[#allocation13 + $0x30] sm:$0xf]
        %v694 = vld [vmem:[#allocation13 + $0x34] sm:$0xf]
        %v695 = vld [vmem:[#allocation13 + $0x38] sm:$0xf]
        %v696 = vld [vmem:[#allocation13 + $0x3c] sm:$0xf]
        %v713 = vunpack.c.l.b16 %v681
        %v714 = vunpack.c.l.b16 %v682
        %v715 = vunpack.c.l.b16 %v683
        %v716 = vunpack.c.l.b16 %v684
        %v717 = vunpack.c.l.b16 %v685
        %v718 = vunpack.c.l.b16 %v686
        %v719 = vunpack.c.l.b16 %v687
        %v720 = vunpack.c.l.b16 %v688
        %v721 = vunpack.c.l.b16 %v689
        %v722 = vunpack.c.l.b16 %v690
        %v723 = vunpack.c.l.b16 %v691
        %v724 = vunpack.c.l.b16 %v692
        %v725 = vunpack.c.l.b16 %v693
        %v726 = vunpack.c.l.b16 %v694
        %v727 = vunpack.c.l.b16 %v695
        %v728 = vunpack.c.l.b16 %v696
        %v729 = vpack.c.b16 %v714, %v713
        %v730 = vpack.c.b16 %v716, %v715
        %v731 = vpack.c.b16 %v718, %v717
        %v732 = vpack.c.b16 %v720, %v719
        %v733 = vpack.c.b16 %v722, %v721
        %v734 = vpack.c.b16 %v724, %v723
        %v735 = vpack.c.b16 %v726, %v725
        %v736 = vpack.c.b16 %v728, %v727
        %745 = vmatprep.subr.bf16.mxu0 0
        %746 = vmatpush1.bf16.msra.mxu0 %v729
        %747 = vmatprep.subr.bf16.mxu0 0
        %748 = vmatpush1.bf16.msra.mxu0 %v730
        %749 = vmatprep.subr.bf16.mxu0 0
        %750 = vmatpush1.bf16.msra.mxu0 %v731
        %751 = vmatprep.subr.bf16.mxu0 0
        %752 = vmatpush1.bf16.msra.mxu0 %v732
        %753 = vmatprep.subr.bf16.mxu0 0
        %754 = vmatpush1.bf16.msra.mxu0 %v733
        %755 = vmatprep.subr.bf16.mxu0 0
        %756 = vmatpush1.bf16.msra.mxu0 %v734
        %757 = vmatprep.subr.bf16.mxu0 0
        %758 = vmatpush1.bf16.msra.mxu0 %v735
        %759 = vmatprep.subr.bf16.mxu0 0
        %760 = vmatpush1.bf16.msra.mxu0 %v736
        %761 = vmatprep.subr.bf16.mxu0 0
        %762 = vmatpush1.bf16.msra.mxu0 0
        %763 = vmatprep.subr.bf16.mxu0 0
        %764 = vmatpush1.bf16.msra.mxu0 0
        %765 = vmatprep.subr.bf16.mxu0 0
        %766 = vmatpush1.bf16.msra.mxu0 0
        %767 = vmatprep.subr.bf16.mxu0 0
        %768 = vmatpush1.bf16.msra.mxu0 0
        %769 = vmatprep.subr.bf16.mxu0 0
        %770 = vmatpush1.bf16.msra.mxu0 0
        %771 = vmatprep.subr.bf16.mxu0 0
        %772 = vmatpush1.bf16.msra.mxu0 0
        %773 = vmatprep.subr.bf16.mxu0 0
        %774 = vmatpush1.bf16.msra.mxu0 0
        %775 = vmatprep.subr.bf16.mxu0 0
        %776 = vmatpush1.bf16.msra.mxu0 0
        %777 = vmatprep.mubr.bf16.mxu0 0
        %778 = vmatmul.mubr.bf16.gmra.mrb[0].mxu0 %v680
        %v779 = vpop.f32.mrb[0].mxu0
        %v780 = vadd.f32 0.0, %v779
        %v781 = vpop.f32.mrb[0].mxu0
        %v782 = vpop.f32.mrb[0].mxu0
        %v783 = vpop.f32.mrb[0].mxu0
        %784 = vdwg.mxu0
        %v785 = vmul.f32 %v563, %v675
        %v786 = vsel %vm524, %v785, 0.0
        %787 = vadd.xlane.f32.xlu0 %v786
        %v788 = vpop.xlane.xlu0 %787
        %790 = vrot.lane.b32.xlu0 %v675, 96
        %v791 = vpop.permute.xlu0 %790
        %v793 = vmul.f32 %v563, %v791
        %v794 = vsel %vm524, %v793, 0.0
        %795 = vadd.xlane.f32.xlu0 %v794
        %v796 = vpop.xlane.xlu0 %795
        %797 = vrot.lane.b32.xlu0 %v675, 64
        %v798 = vpop.permute.xlu0 %797
        %v800 = vmul.f32 %v563, %v798
        %v801 = vsel %vm524, %v800, 0.0
        %802 = vadd.xlane.f32.xlu0 %v801
        %v803 = vpop.xlane.xlu0 %802
        %804 = vrot.lane.b32.xlu0 %v675, 32
        %v805 = vpop.permute.xlu0 %804
        %v807 = vmul.f32 %v563, %v805
        %v808 = vsel %vm524, %v807, 0.0
        %809 = vadd.xlane.f32.xlu0 %v808
        %v810 = vpop.xlane.xlu0 %809
        %v811 = vmax.f32 %v788, %v796
        %v812 = vmax.f32 %v811, %v803
        %v813 = vmax.f32 %v812, %v810
        %v814 = vsub.f32 %v788, %v813
        %v815 = vmul.f32 %v814, 1.442695
        %v816 = vpow.pop %v815
        %v817 = vsub.f32 %v796, %v813
        %v818 = vmul.f32 %v817, 1.442695
        %v819 = vpow.pop %v818
        %v820 = vsub.f32 %v803, %v813
        %v821 = vmul.f32 %v820, 1.442695
        %v822 = vpow.pop %v821
        %v823 = vsub.f32 %v810, %v813
        %v824 = vmul.f32 %v823, 1.442695
        %v825 = vpow.pop %v824
        %v826 = vadd.f32 %v816, %v819
        %v827 = vadd.f32 %v826, %v822
        %v828 = vadd.f32 %v827, %v825
        %v829 = vrcp.pop %v828
        %v830 = vmul.f32 %v816, %v780
        %v831 = vmul.f32 %v819, %v780
        %833 = vrot.lane.b32.xlu0 %v831, 96
        %v834 = vpop.permute.xlu0 %833
        %v836 = vadd.f32 %v830, %v834
        %v837 = vmul.f32 %v822, %v780
        %839 = vrot.lane.b32.xlu0 %v837, 64
        %v840 = vpop.permute.xlu0 %839
        %v842 = vadd.f32 %v836, %v840
        %v843 = vmul.f32 %v825, %v780
        %845 = vrot.lane.b32.xlu0 %v843, 32
        %v846 = vpop.permute.xlu0 %845
        %v848 = vadd.f32 %v842, %v846
        %v849 = vmul.f32 %v848, %v829
        %v850 = vld [vmem:[%s437] sm:$0xff]
        %v851 = vadd.f32 %v849, %v850
        %852 = vst.msk [vmem:[%s498] sm:$0xff] %vm524, %v851
        %s853 = sand.u32 %s250, 1
        %s854 = scalar_lea.sflag [#allocation4], %s853
        %s855 = sand.u32 %s250, 1
        %s856 = smul.addr %s855, 8
        %s857 = scalar_lea.vmem [#allocation14], %s856
        // Predicated region
        $region85: #{tpu_custom_call.1} parent=55 // pred_check
          %p858 = pneg %p260
        $region86: #{tpu_custom_call.1} parent=55 // pred_check_branch
          %860 = sbr.rel (%p858) target = $region88
        $region87: #{tpu_custom_call.1} parent=55 // pred_region
          %s862 = ssub.s32 128, 128
          %863 = vsyncadd %s854, %s862
          %s864 = smul.addr %s33, 128
          %s865 = scalar_lea.hbm %s9, %s864
          %s867 = sshll.u32 %s857, 4
          %s868 = int_to_ptr.vmem [resolvable:$true] %s867
          %870 = dma.vmem_to_hbm [thread:$0]  %s868, 128, %s865, %s854
        $region88: #{tpu_custom_call.1} parent=55 // pred_fallthru
          _
      $region56: #{tpu_custom_call.1} parent=5 // pred_fallthru
        _
      %p871 = scmp.le.s32.totalorder 2, %s28
      // Predicated region
      $region89: #{tpu_custom_call.1} parent=5 // pred_check
        %p872 = pneg %p871
      $region90: #{tpu_custom_call.1} parent=5 // pred_check_branch
        %874 = sbr.rel (%p872) target = $region92
      $region91: #{tpu_custom_call.1} parent=5 // pred_region
        %s875 = ssub.s32 %s28, 2
        // Predicated region
        $region93: #{tpu_custom_call.1} parent=91 // pred_check
          %p876 = pneg %p266
        $region94: #{tpu_custom_call.1} parent=91 // pred_check_branch
          %878 = sbr.rel (%p876) target = $region96
        $region95: #{tpu_custom_call.1} parent=91 // pred_region
          %s879 = sand.u32 %s251, 1
          %s880 = scalar_lea.sflag [#allocation4], %s879
          %s881 = sand.u32 %s251, 1
          %s882 = smul.addr %s881, 8
          %s883 = scalar_lea.vmem [#allocation14], %s882
          %884 = dma.done %s880, 128
        $region96: #{tpu_custom_call.1} parent=91 // pred_fallthru
          _
      $region92: #{tpu_custom_call.1} parent=5 // pred_fallthru
        _
    $region6: #{tpu_custom_call.1} parent=1 // loop_footer
      %s32 = sadd.s32 1, %s28
    $region7: #{tpu_custom_call.1} parent=1 // loop_footer_branch
      %27 = sbr.rel target = $region3
    $region8: #{tpu_custom_call.1} parent=1 // loop_exit
      _
    %885 = vsyncpa [#allocation3], 1
    %s886 = scalar_lea.sflag [#allocation3], 1
    %887 = vsyncpa %s886, 1
    %888 = vsyncpa [#allocation6], 1
    %s889 = scalar_lea.sflag [#allocation6], 1
    %890 = vsyncpa %s889, 1
    %891 = vsyncpa [#allocation9], 1
    %s892 = scalar_lea.sflag [#allocation9], 1
    %893 = vsyncpa %s892, 1
    %894 = vsyncpa [#allocation12], 1
    %895 = vsyncpa [#allocation4], 1
    %s896 = scalar_lea.sflag [#allocation4], 1
    %897 = vsyncpa %s896, 1

</llo_original>
